<compile_context>
chip_gen: v7x
topology: tpu7x:2x2x1
jax: 0.10.0
libtpu: 0.0.40
codegen_flags: <defaults>
</compile_context>

<pallas_src>
import jax
import jax.numpy as jnp
from jax.experimental import pallas as pl
from jax.experimental.pallas import tpu as pltpu

LANE = 128
SUBLANE = 8


def _round_up(x, m):
    return ((x + m - 1) // m) * m


# ---------------------------------------------------------------------------
# Kernel
# ---------------------------------------------------------------------------
def muzero_kernel(
    x_ref,                                  # packed activations (tb, Cp): [state | action | 0]
    w1x_ref,                                # representation L1  (Cp, Hp)  (state rows only)
    w2a_ref,                                # representation L2  (Hp, Hp)  + value head in col H+1
    wd1s_ref,                               # dynamics L1, state part   (Hp, Hp)
    wd1ax_ref,                              # dynamics L1, action part  (Cp, Hp) (rows shifted by S)
    wd2a_ref,                               # dynamics L2 (Hp, Hp) + reward head in col H
    bias_ref,                               # stacked biases / selector (8, Hp), f32
    out_ref,                                # single output (tb, Hp)
):
    cd = w1x_ref.dtype  # MXU input dtype (f32 or bf16); accumulation is f32.

    b1 = bias_ref[0:1, :]
    b2a = bias_ref[1:2, :]                  # includes folded value-head bias at lane H+1
    bd1 = bias_ref[2:3, :]
    bd2a = bias_ref[3:4, :]                 # includes folded reward-head bias at lane H
    value_sel = bias_ref[4:5, :]            # one-hot at lane H+1

    x = x_ref[...]                          # already in compute dtype (no per-tile cast)

    # representation: Linear -> ReLU -> Linear (value head folded into col H+1)
    h1 = jnp.dot(x, w1x_ref[...], preferred_element_type=jnp.float32) + b1
    h1 = jnp.maximum(h1, 0.0)
    srep = jnp.dot(h1.astype(cd), w2a_ref[...], preferred_element_type=jnp.float32) + b2a
    # srep lanes [0,H) = state_rep, lane H+1 = value, others 0.

    # dynamics: Linear(cat[state_rep, action]) -> ReLU -> Linear (split matmul)
    d1 = (
        jnp.dot(srep.astype(cd), wd1s_ref[...], preferred_element_type=jnp.float32)
        + jnp.dot(x, wd1ax_ref[...], preferred_element_type=jnp.float32)
        + bd1
    )
    d1 = jnp.maximum(d1, 0.0)
    nxt = jnp.dot(d1.astype(cd), wd2a_ref[...], preferred_element_type=jnp.float32) + bd2a
    # nxt lanes [0,H) = next_state_rep, lane H = reward, others 0.

    # Inject value (lane H+1 of srep) into the single output; lane H+1 of nxt is 0.
    out = nxt + srep * value_sel
    out_ref[...] = out.astype(out_ref.dtype)


# ---------------------------------------------------------------------------
# Parameters
# ---------------------------------------------------------------------------
def init_params(key, state_dim, action_dim, hidden_dim, dtype=jnp.float32):
    """Deterministic synthetic parameters; weights stored as (in, out)."""
    ks = jax.random.split(key, 12)

    def w(k, shape, fan_in):
        bound = 1.0 / jnp.sqrt(fan_in)
        return jax.random.uniform(k, shape, dtype, -bound, bound)

    H, S, A = hidden_dim, state_dim, action_dim
    return {
        "w1": w(ks[0], (S, H), S),
        "b1": w(ks[1], (1, H), S),
        "w2": w(ks[2], (H, H), H),
        "b2": w(ks[3], (1, H), H),
        # dynamics layer-1 weight of logical shape (H + A, H), stored split.
        "wd1s": w(ks[4], (H, H), H + A),
        "wd1a": w(ks[5], (A, H), H + A),
        "bd1": w(ks[6], (1, H), H + A),
        "wd2": w(ks[7], (H, H), H),
        "bd2": w(ks[8], (1, H), H),
        "wr": w(ks[9], (H, 1), H),
        "br": jnp.zeros((1, 1), dtype),
        "wv": w(ks[10], (H, 1), H),
        "bv": jnp.zeros((1, 1), dtype),
    }


def pack_params(params, compute_dtype=jnp.float32):
    """Pad weights to lane-dense shapes, fold the reward/value heads into
    spare columns, shift the action rows for the packed input, and stack all
    biases (plus the value-injection one-hot) into one (8, Hp) f32 tile."""
    S, H = params["w1"].shape
    A = params["wd1a"].shape[0]
    Cp = _round_up(S + A, LANE)             # packed [state | action] input width
    Hp = _round_up(H + 2, LANE)             # reserve 2 lanes for folded heads

    f32 = lambda w: w.astype(jnp.float32)

    def zeros(shape):
        return jnp.zeros(shape, jnp.float32)

    # representation layer 1 reads state lanes [0, S) of the packed input.
    w1x = zeros((Cp, Hp)).at[:S, :H].set(f32(params["w1"]))
    # dynamics layer 1 action part reads action lanes [S, S+A).
    wd1ax = zeros((Cp, Hp)).at[S:S + A, :H].set(f32(params["wd1a"]))
    # dynamics layer 1 state part (rows >= H stay zero so head lanes don't leak).
    wd1s = zeros((Hp, Hp)).at[:H, :H].set(f32(params["wd1s"]))

    # value head folded into w2 column H+1:  value = h1 @ (w2 @ wv) + (b2 @ wv + bv)
    w2a = zeros((Hp, Hp)).at[:H, :H].set(f32(params["w2"]))
    w2a = w2a.at[:H, H + 1:H + 2].set(f32(params["w2"]) @ f32(params["wv"]))
    # reward head folded into wd2 column H:  reward = d1 @ (wd2 @ wr) + (bd2 @ wr + br)
    wd2a = zeros((Hp, Hp)).at[:H, :H].set(f32(params["wd2"]))
    wd2a = wd2a.at[:H, H:H + 1].set(f32(params["wd2"]) @ f32(params["wr"]))

    biases = zeros((SUBLANE, Hp))
    biases = biases.at[0, :H].set(f32(params["b1"]).reshape(-1))
    biases = biases.at[1, :H].set(f32(params["b2"]).reshape(-1))
    b_val = (f32(params["b2"]) @ f32(params["wv"])).reshape(()) + f32(params["bv"]).reshape(())
    biases = biases.at[1, H + 1].set(b_val)
    biases = biases.at[2, :H].set(f32(params["bd1"]).reshape(-1))
    biases = biases.at[3, :H].set(f32(params["bd2"]).reshape(-1))
    b_rew = (f32(params["bd2"]) @ f32(params["wr"])).reshape(()) + f32(params["br"]).reshape(())
    biases = biases.at[3, H].set(b_rew)
    biases = biases.at[4, H + 1].set(1.0)   # one-hot selector for the value lane

    weights = tuple(w.astype(compute_dtype) for w in (w1x, w2a, wd1s, wd1ax, wd2a))
    meta = dict(S=S, A=A, H=H, Cp=Cp, Hp=Hp)
    return weights + (biases,), meta


# ---------------------------------------------------------------------------
# Forward wrapper
# ---------------------------------------------------------------------------
def muzero_forward(state, action, params, *, compute_dtype=jnp.float32,
                   batch_tile=1024):
    """Mirrors MuZeroModel.forward.  state/action: (B, 1, D) (or 2-D, handled
    exactly like torch's unsqueeze(0) + conditional squeeze(1))."""
    # --- dim handling, faithful to the PyTorch code -------------------------
    if state.ndim == 2:
        state = state[None]          # torch: state.unsqueeze(0)
    if action.ndim == 2:
        action = action[None]
    assert state.ndim == 3 and action.ndim == 3, (state.shape, action.shape)
    s2 = jnp.squeeze(state, axis=1) if state.shape[1] == 1 else state
    a2 = jnp.squeeze(action, axis=1) if action.shape[1] == 1 else action
    assert s2.shape[:-1] == a2.shape[:-1], (s2.shape, a2.shape)
    lead = s2.shape[:-1]

    s_flat = s2.reshape(-1, s2.shape[-1])
    a_flat = a2.reshape(-1, a2.shape[-1])
    B = s_flat.shape[0]
    out_dtype = s_flat.dtype

    # --- pack / pad parameters ----------------------------------------------
    (w1x, w2a, wd1s, wd1ax, wd2a, biases), m = pack_params(params, compute_dtype)
    S, A, H = m["S"], m["A"], m["H"]
    Cp, Hp = m["Cp"], m["Hp"]

    # --- batch tiling --------------------------------------------------------
    itemsize = jnp.dtype(compute_dtype).itemsize
    # Keep the sublane dim packed-dense (8 rows f32, 16 rows bf16).
    row_align = SUBLANE * max(1, 4 // itemsize)
    b_rows = _round_up(B, row_align)
    tb = min(batch_tile, b_rows)
    if b_rows > row_align:
        # Aim for >= 2 grid steps so both v7x TensorCores get work (harmless
        # on single-TC v5e/v6e).
        tb = min(tb, _round_up(pl.cdiv(b_rows, 2), row_align))
    tb = max(row_align, _round_up(tb, row_align))
    Bp = _round_up(b_rows, tb)
    grid = (Bp // tb,)

    # Packed lane-dense input: state in lanes [0,S), action in lanes [S,S+A).
    # Stored in HBM directly in the compute dtype (bf16 path: half the IO bytes,
    # no in-kernel activation cast).
    x = jnp.zeros((Bp, Cp), compute_dtype)
    x = x.at[:B, :S].set(s_flat.astype(compute_dtype))
    x = x.at[:B, S:S + A].set(a_flat.astype(compute_dtype))

    # --- specs / budgets ------------------------------------------------------
    x_spec = pl.BlockSpec((tb, Cp), lambda i: (i, 0))
    out_spec = pl.BlockSpec((tb, Hp), lambda i: (i, 0))
    const_shapes = [(Cp, Hp), (Hp, Hp), (Hp, Hp), (Cp, Hp), (Hp, Hp), (SUBLANE, Hp)]
    args = (x, w1x, w2a, wd1s, wd1ax, wd2a, biases)

    weight_bytes = int(
        (w1x.size + w2a.size + wd1s.size + wd1ax.size + wd2a.size) * itemsize
        + biases.size * 4
    )
    act_bytes = int(2 * tb * (Cp + Hp) * itemsize)      # double-buffered in/out tiles
    interm_bytes = int(6 * tb * Hp * 4)                 # in-kernel f32 temporaries
    # Right-sized scoped VMEM (instead of a blanket 48 MiB): footprint + headroom,
    # capped well below v7x's 64 MiB physical VMEM.
    vmem_limit = int(min(48 << 20,
                         max(8 << 20,
                             2 * weight_bytes + act_bytes + interm_bytes + (4 << 20))))

    flops = int(2 * Bp * (2 * Cp * Hp + 3 * Hp * Hp))
    bytes_accessed = int(weight_bytes + (Bp * Cp + Bp * Hp) * itemsize)

    def run(single_buffer_weights):
        def const_spec(shape):
            # Weights/bias never change across grid steps; keep a single
            # resident copy instead of the default double buffer (matters for
            # v7x's 64 MiB VMEM at realistic hidden sizes).
            if single_buffer_weights:
                return pl.BlockSpec(shape, lambda i: (0,) * len(shape),
                                    pipeline_mode=pl.Buffered(buffer_count=1))
            return pl.BlockSpec(shape, lambda i: (0,) * len(shape))

        return pl.pallas_call(
            muzero_kernel,
            grid=grid,
            in_specs=[x_spec] + [const_spec(s) for s in const_shapes],
            out_specs=out_spec,
            out_shape=jax.ShapeDtypeStruct((Bp, Hp), compute_dtype),
            compiler_params=pltpu.CompilerParams(
                dimension_semantics=("parallel",),
                vmem_limit_bytes=vmem_limit,
            ),
            cost_estimate=pl.CostEstimate(
                flops=flops, transcendentals=0, bytes_accessed=bytes_accessed
            ),
        )(*args)

    try:
        out = run(single_buffer_weights=True)
    except Exception:
        # Fallback for Pallas versions that reject single-buffered pipeline_mode;
        # identical numerics, default double-buffered resident weights.
        out = run(single_buffer_weights=False)

    out = out.astype(jnp.float32)
    next_rep = out[:B, :H].astype(out_dtype).reshape(lead + (H,))
    reward = out[:B, H:H + 1].astype(out_dtype).reshape(lead + (1,))
    value = out[:B, H + 1:H + 2].astype(out_dtype).reshape(lead + (1,))
    return next_rep, reward, value


# ---------------------------------------------------------------------------
# Pure-JAX reference (mirrors the PyTorch graph)
# ---------------------------------------------------------------------------
def muzero_reference(state, action, params):
    if state.ndim == 2:
        state = state[None]
    if action.ndim == 2:
        action = action[None]
    s2 = jnp.squeeze(state, axis=1) if state.shape[1] == 1 else state
    a2 = jnp.squeeze(action, axis=1) if action.shape[1] == 1 else action
    h1 = jnp.maximum(s2 @ params["w1"] + params["b1"], 0.0)
    state_rep = h1 @ params["w2"] + params["b2"]
    cat = jnp.concatenate([state_rep, a2], axis=-1)
    wd1 = jnp.concatenate([params["wd1s"], params["wd1a"]], axis=0)
    d1 = jnp.maximum(cat @ wd1 + params["bd1"], 0.0)
    next_rep = d1 @ params["wd2"] + params["bd2"]
    reward = next_rep @ params["wr"] + params["br"]
    value = state_rep @ params["wv"] + params["bv"]
    return next_rep, reward, value


if __name__ == "__main__":
    B, STATE_DIM, ACTION_DIM, HIDDEN_DIM = 2, 16, 8, 32

    key = jax.random.PRNGKey(0)
    k_state, k_action, k_params = jax.random.split(key, 3)

    state = jax.random.normal(k_state, (B, 1, STATE_DIM), jnp.float32)
    action = jax.random.normal(k_action, (B, 1, ACTION_DIM), jnp.float32)
    params = init_params(k_params, STATE_DIM, ACTION_DIM, HIDDEN_DIM)

    ref_next, ref_reward, ref_value = muzero_reference(state, action, params)

    # --- f32 path: strict check ---------------------------------------------
    next_rep, reward, value = muzero_forward(state, action, params)
    jax.block_until_ready((next_rep, reward, value))
    assert next_rep.shape == (B, HIDDEN_DIM)
    assert reward.shape == (B, 1) and value.shape == (B, 1)
    assert jnp.allclose(next_rep, ref_next, atol=1e-4, rtol=1e-4)
    assert jnp.allclose(reward, ref_reward, atol=1e-4, rtol=1e-4)
    assert jnp.allclose(value, ref_value, atol=1e-4, rtol=1e-4)

    # --- bf16 MXU + bf16-in-HBM path (v6e/v7x lever): loose check ------------
    n16, r16, v16 = muzero_forward(state, action, params,
                                   compute_dtype=jnp.bfloat16)
    jax.block_until_ready((n16, r16, v16))
    assert jnp.allclose(n16.astype(jnp.float32), ref_next, atol=1e-1, rtol=1e-1)
    assert jnp.allclose(r16.astype(jnp.float32), ref_reward, atol=1e-1, rtol=1e-1)
    assert jnp.allclose(v16.astype(jnp.float32), ref_value, atol=1e-1, rtol=1e-1)

    # --- 2-D input fallback (mirrors torch unsqueeze(0)+squeeze(1)) ----------
    n2, r2, v2 = muzero_forward(state[:, 0, :], action[:, 0, :], params)
    jax.block_until_ready((n2, r2, v2))
    assert n2.shape == (1, B, HIDDEN_DIM) and r2.shape == (1, B, 1)
    assert jnp.allclose(n2[0], ref_next, atol=1e-4, rtol=1e-4)
    assert jnp.allclose(r2[0], ref_reward, atol=1e-4, rtol=1e-4)
    assert jnp.allclose(v2[0], ref_value, atol=1e-4, rtol=1e-4)

    # --- larger batch: exercises the >=2-step "parallel" grid path -----------
    BL = 64
    kl1, kl2 = jax.random.split(jax.random.PRNGKey(1))
    state_l = jax.random.normal(kl1, (BL, 1, STATE_DIM), jnp.float32)
    action_l = jax.random.normal(kl2, (BL, 1, ACTION_DIM), jnp.float32)
    refs_l = muzero_reference(state_l, action_l, params)
    outs_l = muzero_forward(state_l, action_l, params)
    jax.block_until_ready(outs_l)
    for o, r in zip(outs_l, refs_l):
        assert o.shape == r.shape
        assert jnp.allclose(o, r, atol=1e-4, rtol=1e-4)

    print("KERNEL_OK")
</pallas_src>

<mosaic_0001>
module attributes {stable_mosaic.version = 11 : i64} {
  func.func @muzero_kernel(%arg0: i32, %arg1: memref<8x128xf32, #tpu.memory_space<vmem>>, %arg2: memref<128x128xf32, #tpu.memory_space<vmem>>, %arg3: memref<128x128xf32, #tpu.memory_space<vmem>>, %arg4: memref<128x128xf32, #tpu.memory_space<vmem>>, %arg5: memref<128x128xf32, #tpu.memory_space<vmem>>, %arg6: memref<128x128xf32, #tpu.memory_space<vmem>>, %arg7: memref<8x128xf32, #tpu.memory_space<vmem>>, %arg8: memref<8x128xf32, #tpu.memory_space<vmem>>) attributes {dimension_semantics = [#tpu.dimension_semantics<parallel>], iteration_bounds = array<i64: 1>, scalar_prefetch = 0 : i64, scratch_operands = 0 : i64, tpu.core_type = #tpu.core_type<tc>, window_params = [{transform_indices = @transform_0, window_bounds = array<i64: 8, 128>}, {pipeline_mode = #tpu.pipeline_mode<synchronous>, transform_indices = @transform_1, window_bounds = array<i64: 128, 128>}, {pipeline_mode = #tpu.pipeline_mode<synchronous>, transform_indices = @transform_2, window_bounds = array<i64: 128, 128>}, {pipeline_mode = #tpu.pipeline_mode<synchronous>, transform_indices = @transform_3, window_bounds = array<i64: 128, 128>}, {pipeline_mode = #tpu.pipeline_mode<synchronous>, transform_indices = @transform_4, window_bounds = array<i64: 128, 128>}, {pipeline_mode = #tpu.pipeline_mode<synchronous>, transform_indices = @transform_5, window_bounds = array<i64: 128, 128>}, {pipeline_mode = #tpu.pipeline_mode<synchronous>, transform_indices = @transform_6, window_bounds = array<i64: 8, 128>}, {transform_indices = @transform_7, window_bounds = array<i64: 8, 128>}]} {
    %c0 = arith.constant 0 : index
    %c0_0 = arith.constant 0 : index
    %0 = vector.load %arg7[%c0, %c0_0] : memref<8x128xf32, #tpu.memory_space<vmem>>, vector<1x128xf32>
    %c1 = arith.constant 1 : index
    %c0_1 = arith.constant 0 : index
    %1 = vector.load %arg7[%c1, %c0_1] : memref<8x128xf32, #tpu.memory_space<vmem>>, vector<1x128xf32>
    %c2 = arith.constant 2 : index
    %c0_2 = arith.constant 0 : index
    %2 = vector.load %arg7[%c2, %c0_2] : memref<8x128xf32, #tpu.memory_space<vmem>>, vector<1x128xf32>
    %c3 = arith.constant 3 : index
    %c0_3 = arith.constant 0 : index
    %3 = vector.load %arg7[%c3, %c0_3] : memref<8x128xf32, #tpu.memory_space<vmem>>, vector<1x128xf32>
    %c4 = arith.constant 4 : index
    %c0_4 = arith.constant 0 : index
    %4 = vector.load %arg7[%c4, %c0_4] : memref<8x128xf32, #tpu.memory_space<vmem>>, vector<1x128xf32>
    %c0_5 = arith.constant 0 : index
    %c0_6 = arith.constant 0 : index
    %5 = vector.load %arg1[%c0_5, %c0_6] : memref<8x128xf32, #tpu.memory_space<vmem>>, vector<8x128xf32>
    %c0_7 = arith.constant 0 : index
    %c0_8 = arith.constant 0 : index
    %6 = vector.load %arg2[%c0_7, %c0_8] : memref<128x128xf32, #tpu.memory_space<vmem>>, vector<128x128xf32>
    %cst = arith.constant dense<0.000000e+00> : vector<8x128xf32>
    %7 = tpu.matmul %5, %6, %cst {dimension_numbers = #tpu.dot_dimension_numbers<[1], [0], [0], [1], [0, 0, 1, 1], [], []>} : vector<8x128xf32>, vector<128x128xf32>, vector<8x128xf32> -> vector<8x128xf32>
    %8 = vector.broadcast %0 : vector<1x128xf32> to vector<8x128xf32>
    %9 = arith.addf %7, %8 : vector<8x128xf32>
    %cst_9 = arith.constant 0.000000e+00 : f32
    %10 = vector.broadcast %cst_9 : f32 to vector<8x128xf32>
    %11 = arith.maximumf %9, %10 : vector<8x128xf32>
    %c0_10 = arith.constant 0 : index
    %c0_11 = arith.constant 0 : index
    %12 = vector.load %arg3[%c0_10, %c0_11] : memref<128x128xf32, #tpu.memory_space<vmem>>, vector<128x128xf32>
    %cst_12 = arith.constant dense<0.000000e+00> : vector<8x128xf32>
    %13 = tpu.matmul %11, %12, %cst_12 {dimension_numbers = #tpu.dot_dimension_numbers<[1], [0], [0], [1], [0, 0, 1, 1], [], []>} : vector<8x128xf32>, vector<128x128xf32>, vector<8x128xf32> -> vector<8x128xf32>
    %14 = vector.broadcast %1 : vector<1x128xf32> to vector<8x128xf32>
    %15 = arith.addf %13, %14 : vector<8x128xf32>
    %c0_13 = arith.constant 0 : index
    %c0_14 = arith.constant 0 : index
    %16 = vector.load %arg4[%c0_13, %c0_14] : memref<128x128xf32, #tpu.memory_space<vmem>>, vector<128x128xf32>
    %cst_15 = arith.constant dense<0.000000e+00> : vector<8x128xf32>
    %17 = tpu.matmul %15, %16, %cst_15 {dimension_numbers = #tpu.dot_dimension_numbers<[1], [0], [0], [1], [0, 0, 1, 1], [], []>} : vector<8x128xf32>, vector<128x128xf32>, vector<8x128xf32> -> vector<8x128xf32>
    %c0_16 = arith.constant 0 : index
    %c0_17 = arith.constant 0 : index
    %18 = vector.load %arg5[%c0_16, %c0_17] : memref<128x128xf32, #tpu.memory_space<vmem>>, vector<128x128xf32>
    %cst_18 = arith.constant dense<0.000000e+00> : vector<8x128xf32>
    %19 = tpu.matmul %5, %18, %cst_18 {dimension_numbers = #tpu.dot_dimension_numbers<[1], [0], [0], [1], [0, 0, 1, 1], [], []>} : vector<8x128xf32>, vector<128x128xf32>, vector<8x128xf32> -> vector<8x128xf32>
    %20 = arith.addf %17, %19 : vector<8x128xf32>
    %21 = vector.broadcast %2 : vector<1x128xf32> to vector<8x128xf32>
    %22 = arith.addf %20, %21 : vector<8x128xf32>
    %cst_19 = arith.constant 0.000000e+00 : f32
    %23 = vector.broadcast %cst_19 : f32 to vector<8x128xf32>
    %24 = arith.maximumf %22, %23 : vector<8x128xf32>
    %c0_20 = arith.constant 0 : index
    %c0_21 = arith.constant 0 : index
    %25 = vector.load %arg6[%c0_20, %c0_21] : memref<128x128xf32, #tpu.memory_space<vmem>>, vector<128x128xf32>
    %cst_22 = arith.constant dense<0.000000e+00> : vector<8x128xf32>
    %26 = tpu.matmul %24, %25, %cst_22 {dimension_numbers = #tpu.dot_dimension_numbers<[1], [0], [0], [1], [0, 0, 1, 1], [], []>} : vector<8x128xf32>, vector<128x128xf32>, vector<8x128xf32> -> vector<8x128xf32>
    %27 = vector.broadcast %3 : vector<1x128xf32> to vector<8x128xf32>
    %28 = arith.addf %26, %27 : vector<8x128xf32>
    %29 = vector.broadcast %4 : vector<1x128xf32> to vector<8x128xf32>
    %30 = arith.mulf %15, %29 : vector<8x128xf32>
    %31 = arith.addf %28, %30 : vector<8x128xf32>
    %c0_23 = arith.constant 0 : index
    %c0_24 = arith.constant 0 : index
    %32 = vector.load %arg8[%c0_23, %c0_24] : memref<8x128xf32, #tpu.memory_space<vmem>>, vector<8x128xf32>
    tpu.vector_store %arg8[%c0_23, %c0_24], %31 {strides = array<i32>} : memref<8x128xf32, #tpu.memory_space<vmem>>, vector<8x128xf32>,
    return
  }
  func.func @transform_0(%arg0: i32) -> (i32, i32) {
    %c0_i32 = arith.constant 0 : i32
    %c0_i32_0 = arith.constant 0 : i32
    return %arg0, %c0_i32 : i32, i32
  }
  func.func @transform_1(%arg0: i32) -> (i32, i32) {
    %c0_i32 = arith.constant 0 : i32
    %c0_i32_0 = arith.constant 0 : i32
    %c0_i32_1 = arith.constant 0 : i32
    return %c0_i32, %c0_i32_0 : i32, i32
  }
  func.func @transform_2(%arg0: i32) -> (i32, i32) {
    %c0_i32 = arith.constant 0 : i32
    %c0_i32_0 = arith.constant 0 : i32
    %c0_i32_1 = arith.constant 0 : i32
    return %c0_i32, %c0_i32_0 : i32, i32
  }
  func.func @transform_3(%arg0: i32) -> (i32, i32) {
    %c0_i32 = arith.constant 0 : i32
    %c0_i32_0 = arith.constant 0 : i32
    %c0_i32_1 = arith.constant 0 : i32
    return %c0_i32, %c0_i32_0 : i32, i32
  }
  func.func @transform_4(%arg0: i32) -> (i32, i32) {
    %c0_i32 = arith.constant 0 : i32
    %c0_i32_0 = arith.constant 0 : i32
    %c0_i32_1 = arith.constant 0 : i32
    return %c0_i32, %c0_i32_0 : i32, i32
  }
  func.func @transform_5(%arg0: i32) -> (i32, i32) {
    %c0_i32 = arith.constant 0 : i32
    %c0_i32_0 = arith.constant 0 : i32
    %c0_i32_1 = arith.constant 0 : i32
    return %c0_i32, %c0_i32_0 : i32, i32
  }
  func.func @transform_6(%arg0: i32) -> (i32, i32) {
    %c0_i32 = arith.constant 0 : i32
    %c0_i32_0 = arith.constant 0 : i32
    %c0_i32_1 = arith.constant 0 : i32
    return %c0_i32, %c0_i32_0 : i32, i32
  }
  func.func @transform_7(%arg0: i32) -> (i32, i32) {
    %c0_i32 = arith.constant 0 : i32
    %c0_i32_0 = arith.constant 0 : i32
    return %arg0, %c0_i32 : i32, i32
  }
}

module attributes {stable_mosaic.version = 11 : i64} {
  func.func @muzero_kernel(%arg0: i32, %arg1: memref<8x128xf32, #tpu.memory_space<vmem>>, %arg2: memref<128x128xf32, #tpu.memory_space<vmem>>, %arg3: memref<128x128xf32, #tpu.memory_space<vmem>>, %arg4: memref<128x128xf32, #tpu.memory_space<vmem>>, %arg5: memref<128x128xf32, #tpu.memory_space<vmem>>, %arg6: memref<128x128xf32, #tpu.memory_space<vmem>>, %arg7: memref<8x128xf32, #tpu.memory_space<vmem>>, %arg8: memref<8x128xf32, #tpu.memory_space<vmem>>) attributes {dimension_semantics = [#tpu.dimension_semantics<parallel>], iteration_bounds = array<i64: 1>, scalar_prefetch = 0 : i64, scratch_operands = 0 : i64, tpu.core_type = #tpu.core_type<tc>, window_params = [{transform_indices = @transform_0, window_bounds = array<i64: 8, 128>}, {pipeline_mode = #tpu.pipeline_mode<synchronous>, transform_indices = @transform_1, window_bounds = array<i64: 128, 128>}, {pipeline_mode = #tpu.pipeline_mode<synchronous>, transform_indices = @transform_2, window_bounds = array<i64: 128, 128>}, {pipeline_mode = #tpu.pipeline_mode<synchronous>, transform_indices = @transform_3, window_bounds = array<i64: 128, 128>}, {pipeline_mode = #tpu.pipeline_mode<synchronous>, transform_indices = @transform_4, window_bounds = array<i64: 128, 128>}, {pipeline_mode = #tpu.pipeline_mode<synchronous>, transform_indices = @transform_5, window_bounds = array<i64: 128, 128>}, {pipeline_mode = #tpu.pipeline_mode<synchronous>, transform_indices = @transform_6, window_bounds = array<i64: 8, 128>}, {transform_indices = @transform_7, window_bounds = array<i64: 8, 128>}]} {
    %c0 = arith.constant 0 : index
    %c0_0 = arith.constant 0 : index
    %0 = vector.load %arg7[%c0, %c0_0] : memref<8x128xf32, #tpu.memory_space<vmem>>, vector<1x128xf32>
    %c1 = arith.constant 1 : index
    %c0_1 = arith.constant 0 : index
    %1 = vector.load %arg7[%c1, %c0_1] : memref<8x128xf32, #tpu.memory_space<vmem>>, vector<1x128xf32>
    %c2 = arith.constant 2 : index
    %c0_2 = arith.constant 0 : index
    %2 = vector.load %arg7[%c2, %c0_2] : memref<8x128xf32, #tpu.memory_space<vmem>>, vector<1x128xf32>
    %c3 = arith.constant 3 : index
    %c0_3 = arith.constant 0 : index
    %3 = vector.load %arg7[%c3, %c0_3] : memref<8x128xf32, #tpu.memory_space<vmem>>, vector<1x128xf32>
    %c4 = arith.constant 4 : index
    %c0_4 = arith.constant 0 : index
    %4 = vector.load %arg7[%c4, %c0_4] : memref<8x128xf32, #tpu.memory_space<vmem>>, vector<1x128xf32>
    %c0_5 = arith.constant 0 : index
    %c0_6 = arith.constant 0 : index
    %5 = vector.load %arg1[%c0_5, %c0_6] : memref<8x128xf32, #tpu.memory_space<vmem>>, vector<8x128xf32>
    %c0_7 = arith.constant 0 : index
    %c0_8 = arith.constant 0 : index
    %6 = vector.load %arg2[%c0_7, %c0_8] : memref<128x128xf32, #tpu.memory_space<vmem>>, vector<128x128xf32>
    %cst = arith.constant dense<0.000000e+00> : vector<8x128xf32>
    %7 = tpu.matmul %5, %6, %cst {dimension_numbers = #tpu.dot_dimension_numbers<[1], [0], [0], [1], [0, 0, 1, 1], [], []>} : vector<8x128xf32>, vector<128x128xf32>, vector<8x128xf32> -> vector<8x128xf32>
    %8 = vector.broadcast %0 : vector<1x128xf32> to vector<8x128xf32>
    %9 = arith.addf %7, %8 : vector<8x128xf32>
    %cst_9 = arith.constant 0.000000e+00 : f32
    %10 = vector.broadcast %cst_9 : f32 to vector<8x128xf32>
    %11 = arith.maximumf %9, %10 : vector<8x128xf32>
    %c0_10 = arith.constant 0 : index
    %c0_11 = arith.constant 0 : index
    %12 = vector.load %arg3[%c0_10, %c0_11] : memref<128x128xf32, #tpu.memory_space<vmem>>, vector<128x128xf32>
    %cst_12 = arith.constant dense<0.000000e+00> : vector<8x128xf32>
    %13 = tpu.matmul %11, %12, %cst_12 {dimension_numbers = #tpu.dot_dimension_numbers<[1], [0], [0], [1], [0, 0, 1, 1], [], []>} : vector<8x128xf32>, vector<128x128xf32>, vector<8x128xf32> -> vector<8x128xf32>
    %14 = vector.broadcast %1 : vector<1x128xf32> to vector<8x128xf32>
    %15 = arith.addf %13, %14 : vector<8x128xf32>
    %c0_13 = arith.constant 0 : index
    %c0_14 = arith.constant 0 : index
    %16 = vector.load %arg4[%c0_13, %c0_14] : memref<128x128xf32, #tpu.memory_space<vmem>>, vector<128x128xf32>
    %cst_15 = arith.constant dense<0.000000e+00> : vector<8x128xf32>
    %17 = tpu.matmul %15, %16, %cst_15 {dimension_numbers = #tpu.dot_dimension_numbers<[1], [0], [0], [1], [0, 0, 1, 1], [], []>} : vector<8x128xf32>, vector<128x128xf32>, vector<8x128xf32> -> vector<8x128xf32>
    %c0_16 = arith.constant 0 : index
    %c0_17 = arith.constant 0 : index
    %18 = vector.load %arg5[%c0_16, %c0_17] : memref<128x128xf32, #tpu.memory_space<vmem>>, vector<128x128xf32>
    %cst_18 = arith.constant dense<0.000000e+00> : vector<8x128xf32>
    %19 = tpu.matmul %5, %18, %cst_18 {dimension_numbers = #tpu.dot_dimension_numbers<[1], [0], [0], [1], [0, 0, 1, 1], [], []>} : vector<8x128xf32>, vector<128x128xf32>, vector<8x128xf32> -> vector<8x128xf32>
    %20 = arith.addf %17, %19 : vector<8x128xf32>
    %21 = vector.broadcast %2 : vector<1x128xf32> to vector<8x128xf32>
    %22 = arith.addf %20, %21 : vector<8x128xf32>
    %cst_19 = arith.constant 0.000000e+00 : f32
    %23 = vector.broadcast %cst_19 : f32 to vector<8x128xf32>
    %24 = arith.maximumf %22, %23 : vector<8x128xf32>
    %c0_20 = arith.constant 0 : index
    %c0_21 = arith.constant 0 : index
    %25 = vector.load %arg6[%c0_20, %c0_21] : memref<128x128xf32, #tpu.memory_space<vmem>>, vector<128x128xf32>
    %cst_22 = arith.constant dense<0.000000e+00> : vector<8x128xf32>
    %26 = tpu.matmul %24, %25, %cst_22 {dimension_numbers = #tpu.dot_dimension_numbers<[1], [0], [0], [1], [0, 0, 1, 1], [], []>} : vector<8x128xf32>, vector<128x128xf32>, vector<8x128xf32> -> vector<8x128xf32>
    %27 = vector.broadcast %3 : vector<1x128xf32> to vector<8x128xf32>
    %28 = arith.addf %26, %27 : vector<8x128xf32>
    %29 = vector.broadcast %4 : vector<1x128xf32> to vector<8x128xf32>
    %30 = arith.mulf %15, %29 : vector<8x128xf32>
    %31 = arith.addf %28, %30 : vector<8x128xf32>
    %c0_23 = arith.constant 0 : index
    %c0_24 = arith.constant 0 : index
    %32 = vector.load %arg8[%c0_23, %c0_24] : memref<8x128xf32, #tpu.memory_space<vmem>>, vector<8x128xf32>
    tpu.vector_store %arg8[%c0_23, %c0_24], %31 {strides = array<i32>} : memref<8x128xf32, #tpu.memory_space<vmem>>, vector<8x128xf32>,
    return
  }
  func.func @transform_0(%arg0: i32) -> (i32, i32) {
    %c0_i32 = arith.constant 0 : i32
    %c0_i32_0 = arith.constant 0 : i32
    return %arg0, %c0_i32 : i32, i32
  }
  func.func @transform_1(%arg0: i32) -> (i32, i32) {
    %c0_i32 = arith.constant 0 : i32
    %c0_i32_0 = arith.constant 0 : i32
    %c0_i32_1 = arith.constant 0 : i32
    return %c0_i32, %c0_i32_0 : i32, i32
  }
  func.func @transform_2(%arg0: i32) -> (i32, i32) {
    %c0_i32 = arith.constant 0 : i32
    %c0_i32_0 = arith.constant 0 : i32
    %c0_i32_1 = arith.constant 0 : i32
    return %c0_i32, %c0_i32_0 : i32, i32
  }
  func.func @transform_3(%arg0: i32) -> (i32, i32) {
    %c0_i32 = arith.constant 0 : i32
    %c0_i32_0 = arith.constant 0 : i32
    %c0_i32_1 = arith.constant 0 : i32
    return %c0_i32, %c0_i32_0 : i32, i32
  }
  func.func @transform_4(%arg0: i32) -> (i32, i32) {
    %c0_i32 = arith.constant 0 : i32
    %c0_i32_0 = arith.constant 0 : i32
    %c0_i32_1 = arith.constant 0 : i32
    return %c0_i32, %c0_i32_0 : i32, i32
  }
  func.func @transform_5(%arg0: i32) -> (i32, i32) {
    %c0_i32 = arith.constant 0 : i32
    %c0_i32_0 = arith.constant 0 : i32
    %c0_i32_1 = arith.constant 0 : i32
    return %c0_i32, %c0_i32_0 : i32, i32
  }
  func.func @transform_6(%arg0: i32) -> (i32, i32) {
    %c0_i32 = arith.constant 0 : i32
    %c0_i32_0 = arith.constant 0 : i32
    %c0_i32_1 = arith.constant 0 : i32
    return %c0_i32, %c0_i32_0 : i32, i32
  }
  func.func @transform_7(%arg0: i32) -> (i32, i32) {
    %c0_i32 = arith.constant 0 : i32
    %c0_i32_0 = arith.constant 0 : i32
    return %arg0, %c0_i32 : i32, i32
  }
}

</mosaic_0001>

<llo_original>
// kernel: tpu_custom_call.1
$region0: #{tpu_custom_call.1}
  #allocation0 [shape = 'u32[]', space=smem, size = 0x4, offset = 0x4, fixed_abs, tag = 'smem constant byte address 0x4 - core index']
  #allocation1 [shape = 'u32[144,128]{1,0:T(1,128)}', space=vmem, size = 0x12000, scoped, tag = 'internal scratch']
  %s0 = inlined_call_operand.hbm [shape: f32[8,128], index: 0, kind: input, shape index: {}]
  %s1 = inlined_call_operand.hbm [shape: f32[128,128], index: 1, kind: input, shape index: {}]
  %s2 = inlined_call_operand.hbm [shape: f32[128,128], index: 2, kind: input, shape index: {}]
  %s3 = inlined_call_operand.hbm [shape: f32[128,128], index: 3, kind: input, shape index: {}]
  %s4 = inlined_call_operand.hbm [shape: f32[128,128], index: 4, kind: input, shape index: {}]
  %s5 = inlined_call_operand.hbm [shape: f32[128,128], index: 5, kind: input, shape index: {}]
  %s6 = inlined_call_operand.vmem [shape: f32[8,128], index: 6, kind: input, shape index: {}]
  %s7 = inlined_call_operand.hbm [shape: f32[8,128], index: 7, kind: output, shape index: {}]
  %s8 = sld [smem:[#allocation0]]
  $region62: #{tpu_custom_call.1} parent=0
    _
  %s10 = ssub.s32 1, %s8
  %s11 = scalar_select 0, %s10, %s8
  $region1: #{tpu_custom_call.1} parent=0
    #allocation2 [shape = 'u8[4096]{0}', space=vmem, size = 0x1000, scoped, tag = 'input window, operand 0, single buffered']
    #allocation3 [shape = 's32[1]{0}', space=sflag, size = 0x4, scoped, tag = 'scoped memory for tpu_custom_call.1']
    #allocation4 [shape = 's32[1]{0}', space=sflag, size = 0x4, scoped, tag = 'scoped memory for tpu_custom_call.1']
    #allocation5 [shape = 'u8[65536]{0}', space=vmem, size = 0x10000, scoped, tag = 'input window, operand 1, single buffered']
    #allocation6 [shape = 's32[1]{0}', space=sflag, size = 0x4, scoped, tag = 'scoped memory for tpu_custom_call.1']
    #allocation7 [shape = 'u8[65536]{0}', space=vmem, size = 0x10000, scoped, tag = 'input window, operand 2, single buffered']
    #allocation8 [shape = 'u8[65536]{0}', space=vmem, size = 0x10000, scoped, tag = 'input window, operand 3, single buffered']
    #allocation9 [shape = 's32[1]{0}', space=sflag, size = 0x4, scoped, tag = 'scoped memory for tpu_custom_call.1']
    #allocation10 [shape = 'u8[65536]{0}', space=vmem, size = 0x10000, scoped, tag = 'input window, operand 4, single buffered']
    #allocation11 [shape = 'u8[65536]{0}', space=vmem, size = 0x10000, scoped, tag = 'input window, operand 5, single buffered']
    #allocation12 [shape = 's32[1]{0}', space=sflag, size = 0x4, scoped, tag = 'scoped memory for tpu_custom_call.1']
    #allocation13 [shape = 'u8[4096]{0}', space=vmem, size = 0x1000, scoped, tag = 'output window, operand 0, single buffered']
    %12 = vsyncpa [#allocation3], 0
    %13 = vsyncpa [#allocation6], 0
    %14 = vsyncpa [#allocation9], 0
    %15 = vsyncpa [#allocation12], 0
    %16 = vsyncpa [#allocation4], 0
    // Predicated region
    $region2: #{tpu_custom_call.1} parent=1 // pred_check
      _
    $region3: #{tpu_custom_call.1} parent=1 // pred_check_branch
      %18 = sbr.rel (0) target = $region5
    $region4: #{tpu_custom_call.1} parent=1 // pred_region
      %s20 = ssub.s32 128, 128
      %21 = vsyncadd [#allocation3], %s20
      %s23 = sshll.u32 [#allocation2], 4
      %s24 = int_to_ptr.vmem [resolvable:$true] %s23
      %26 = dma.hbm_to_vmem [thread:$0]  %s0, 128, %s24, [#allocation3]
    $region5: #{tpu_custom_call.1} parent=1 // pred_fallthru
      _
    // Predicated region
    $region6: #{tpu_custom_call.1} parent=1 // pred_check
      _
    $region7: #{tpu_custom_call.1} parent=1 // pred_check_branch
      %28 = sbr.rel (0) target = $region9
    $region8: #{tpu_custom_call.1} parent=1 // pred_region
      %s30 = ssub.s32 2048, 2048
      %31 = vsyncadd [#allocation6], %s30
      %s32 = sshll.u32 [#allocation5], 4
      %s33 = int_to_ptr.vmem [resolvable:$true] %s32
      %38 = dma.hbm_to_vmem [thread:$0]  %s1, 2048, %s33, [#allocation6], 128, 128, 8
    $region9: #{tpu_custom_call.1} parent=1 // pred_fallthru
      _
    // Predicated region
    $region10: #{tpu_custom_call.1} parent=1 // pred_check
      _
    $region11: #{tpu_custom_call.1} parent=1 // pred_check_branch
      %40 = sbr.rel (0) target = $region13
    $region12: #{tpu_custom_call.1} parent=1 // pred_region
      %s42 = ssub.s32 2048, 2048
      %43 = vsyncadd [#allocation6], %s42
      %s44 = sshll.u32 [#allocation7], 4
      %s45 = int_to_ptr.vmem [resolvable:$true] %s44
      %50 = dma.hbm_to_vmem [thread:$0]  %s2, 2048, %s45, [#allocation6], 128, 128, 8
    $region13: #{tpu_custom_call.1} parent=1 // pred_fallthru
      _
    // Predicated region
    $region14: #{tpu_custom_call.1} parent=1 // pred_check
      _
    $region15: #{tpu_custom_call.1} parent=1 // pred_check_branch
      %52 = sbr.rel (0) target = $region17
    $region16: #{tpu_custom_call.1} parent=1 // pred_region
      %s54 = ssub.s32 2048, 2048
      %55 = vsyncadd [#allocation9], %s54
      %s56 = sshll.u32 [#allocation8], 4
      %s57 = int_to_ptr.vmem [resolvable:$true] %s56
      %62 = dma.hbm_to_vmem [thread:$0]  %s3, 2048, %s57, [#allocation9], 128, 128, 8
    $region17: #{tpu_custom_call.1} parent=1 // pred_fallthru
      _
    // Predicated region
    $region18: #{tpu_custom_call.1} parent=1 // pred_check
      _
    $region19: #{tpu_custom_call.1} parent=1 // pred_check_branch
      %64 = sbr.rel (0) target = $region21
    $region20: #{tpu_custom_call.1} parent=1 // pred_region
      %s66 = ssub.s32 2048, 2048
      %67 = vsyncadd [#allocation9], %s66
      %s68 = sshll.u32 [#allocation10], 4
      %s69 = int_to_ptr.vmem [resolvable:$true] %s68
      %74 = dma.hbm_to_vmem [thread:$0]  %s4, 2048, %s69, [#allocation9], 128, 128, 8
    $region21: #{tpu_custom_call.1} parent=1 // pred_fallthru
      _
    // Predicated region
    $region22: #{tpu_custom_call.1} parent=1 // pred_check
      _
    $region23: #{tpu_custom_call.1} parent=1 // pred_check_branch
      %76 = sbr.rel (0) target = $region25
    $region24: #{tpu_custom_call.1} parent=1 // pred_region
      %s78 = ssub.s32 2048, 2048
      %79 = vsyncadd [#allocation12], %s78
      %s80 = sshll.u32 [#allocation11], 4
      %s81 = int_to_ptr.vmem [resolvable:$true] %s80
      %86 = dma.hbm_to_vmem [thread:$0]  %s5, 2048, %s81, [#allocation12], 128, 128, 8
    $region25: #{tpu_custom_call.1} parent=1 // pred_fallthru
      _
    // Predicated region
    $region26: #{tpu_custom_call.1} parent=1 // pred_check
      _
    $region27: #{tpu_custom_call.1} parent=1 // pred_check_branch
      %88 = sbr.rel (0) target = $region29
    $region28: #{tpu_custom_call.1} parent=1 // pred_region
      _
    $region29: #{tpu_custom_call.1} parent=1 // pred_fallthru
      _
    // Predicated region
    $region30: #{tpu_custom_call.1} parent=1 // pred_check
      _
    $region31: #{tpu_custom_call.1} parent=1 // pred_check_branch
      %90 = sbr.rel (0) target = $region33
    $region32: #{tpu_custom_call.1} parent=1 // pred_region
      %91 = dma.done [#allocation3], 128
    $region33: #{tpu_custom_call.1} parent=1 // pred_fallthru
      _
    // Predicated region
    $region34: #{tpu_custom_call.1} parent=1 // pred_check
      _
    $region35: #{tpu_custom_call.1} parent=1 // pred_check_branch
      %93 = sbr.rel (0) target = $region37
    $region36: #{tpu_custom_call.1} parent=1 // pred_region
      %94 = dma.done [#allocation6], 2048
    $region37: #{tpu_custom_call.1} parent=1 // pred_fallthru
      _
    // Predicated region
    $region38: #{tpu_custom_call.1} parent=1 // pred_check
      _
    $region39: #{tpu_custom_call.1} parent=1 // pred_check_branch
      %96 = sbr.rel (0) target = $region41
    $region40: #{tpu_custom_call.1} parent=1 // pred_region
      %97 = dma.done [#allocation6], 2048
    $region41: #{tpu_custom_call.1} parent=1 // pred_fallthru
      _
    // Predicated region
    $region42: #{tpu_custom_call.1} parent=1 // pred_check
      _
    $region43: #{tpu_custom_call.1} parent=1 // pred_check_branch
      %99 = sbr.rel (0) target = $region45
    $region44: #{tpu_custom_call.1} parent=1 // pred_region
      %100 = dma.done [#allocation9], 2048
    $region45: #{tpu_custom_call.1} parent=1 // pred_fallthru
      _
    // Predicated region
    $region46: #{tpu_custom_call.1} parent=1 // pred_check
      _
    $region47: #{tpu_custom_call.1} parent=1 // pred_check_branch
      %102 = sbr.rel (0) target = $region49
    $region48: #{tpu_custom_call.1} parent=1 // pred_region
      %103 = dma.done [#allocation9], 2048
    $region49: #{tpu_custom_call.1} parent=1 // pred_fallthru
      _
    // Predicated region
    $region50: #{tpu_custom_call.1} parent=1 // pred_check
      _
    $region51: #{tpu_custom_call.1} parent=1 // pred_check_branch
      %105 = sbr.rel (0) target = $region53
    $region52: #{tpu_custom_call.1} parent=1 // pred_region
      %106 = dma.done [#allocation12], 2048
    $region53: #{tpu_custom_call.1} parent=1 // pred_fallthru
      _
    %v107 = vld [vmem:[%s6] sm:$0x1]
    %v108 = vld [vmem:[%s6 + $0x1] sm:$0x1]
    %v109 = vld [vmem:[%s6 + $0x2] sm:$0x1]
    %v110 = vld [vmem:[%s6 + $0x3] sm:$0x1]
    %v111 = vld [vmem:[%s6 + $0x4] sm:$0x1]
    %v112 = vld [vmem:[#allocation2] sm:$0xff]
    %v113 = vld [vmem:[#allocation5] sm:$0xff]
    %v114 = vld [vmem:[#allocation5 + $0x8] sm:$0xff]
    %v115 = vld [vmem:[#allocation5 + $0x10] sm:$0xff]
    %v116 = vld [vmem:[#allocation5 + $0x18] sm:$0xff]
    %v117 = vld [vmem:[#allocation5 + $0x20] sm:$0xff]
    %v118 = vld [vmem:[#allocation5 + $0x28] sm:$0xff]
    %v119 = vld [vmem:[#allocation5 + $0x30] sm:$0xff]
    %v120 = vld [vmem:[#allocation5 + $0x38] sm:$0xff]
    %v121 = vld [vmem:[#allocation5 + $0x40] sm:$0xff]
    %v122 = vld [vmem:[#allocation5 + $0x48] sm:$0xff]
    %v123 = vld [vmem:[#allocation5 + $0x50] sm:$0xff]
    %v124 = vld [vmem:[#allocation5 + $0x58] sm:$0xff]
    %v125 = vld [vmem:[#allocation5 + $0x60] sm:$0xff]
    %v126 = vld [vmem:[#allocation5 + $0x68] sm:$0xff]
    %v127 = vld [vmem:[#allocation5 + $0x70] sm:$0xff]
    %v128 = vld [vmem:[#allocation5 + $0x78] sm:$0xff]
    %v129 = vlaneseq
    %v130 = vshrl.u32 %v129, 7
    %v131 = vsub.s32 0, %v130
    %v132 = vrot.slane %v107, %v131
    %133 = vmatprep.subr.mxu0 0.0
    %134 = vmatpush1.msra.mxu0 %v113
    %135 = vmatprep.subr.mxu0 0.0
    %136 = vmatpush1.msra.mxu0 %v114
    %137 = vmatprep.subr.mxu0 0.0
    %138 = vmatpush1.msra.mxu0 %v115
    %139 = vmatprep.subr.mxu0 0.0
    %140 = vmatpush1.msra.mxu0 %v116
    %141 = vmatprep.subr.mxu0 0.0
    %142 = vmatpush1.msra.mxu0 %v117
    %143 = vmatprep.subr.mxu0 0.0
    %144 = vmatpush1.msra.mxu0 %v118
    %145 = vmatprep.subr.mxu0 0.0
    %146 = vmatpush1.msra.mxu0 %v119
    %147 = vmatprep.subr.mxu0 0.0
    %148 = vmatpush1.msra.mxu0 %v120
    %149 = vmatprep.subr.mxu0 0.0
    %150 = vmatpush1.msra.mxu0 %v121
    %151 = vmatprep.subr.mxu0 0.0
    %152 = vmatpush1.msra.mxu0 %v122
    %153 = vmatprep.subr.mxu0 0.0
    %154 = vmatpush1.msra.mxu0 %v123
    %155 = vmatprep.subr.mxu0 0.0
    %156 = vmatpush1.msra.mxu0 %v124
    %157 = vmatprep.subr.mxu0 0.0
    %158 = vmatpush1.msra.mxu0 %v125
    %159 = vmatprep.subr.mxu0 0.0
    %160 = vmatpush1.msra.mxu0 %v126
    %161 = vmatprep.subr.mxu0 0.0
    %162 = vmatpush1.msra.mxu0 %v127
    %163 = vmatprep.subr.mxu0 0.0
    %164 = vmatpush1.msra.mxu0 %v128
    %165 = vmatprep.subr.mxu0 0.0
    %166 = vmatpush1.msra.mxu0 0.0
    %167 = vmatprep.subr.mxu0 0.0
    %168 = vmatpush1.msra.mxu0 0.0
    %169 = vmatprep.subr.mxu0 0.0
    %170 = vmatpush1.msra.mxu0 0.0
    %171 = vmatprep.subr.mxu0 0.0
    %172 = vmatpush1.msra.mxu0 0.0
    %173 = vmatprep.subr.mxu0 0.0
    %174 = vmatpush1.msra.mxu0 0.0
    %175 = vmatprep.subr.mxu0 0.0
    %176 = vmatpush1.msra.mxu0 0.0
    %177 = vmatprep.subr.mxu0 0.0
    %178 = vmatpush1.msra.mxu0 0.0
    %179 = vmatprep.subr.mxu0 0.0
    %180 = vmatpush1.msra.mxu0 0.0
    %181 = vmatprep.subr.mxu0 0.0
    %182 = vmatpush1.msra.mxu0 0.0
    %183 = vmatprep.subr.mxu0 0.0
    %184 = vmatpush1.msra.mxu0 0.0
    %185 = vmatprep.subr.mxu0 0.0
    %186 = vmatpush1.msra.mxu0 0.0
    %187 = vmatprep.subr.mxu0 0.0
    %188 = vmatpush1.msra.mxu0 0.0
    %189 = vmatprep.subr.mxu0 0.0
    %190 = vmatpush1.msra.mxu0 0.0
    %191 = vmatprep.subr.mxu0 0.0
    %192 = vmatpush1.msra.mxu0 0.0
    %193 = vmatprep.subr.mxu0 0.0
    %194 = vmatpush1.msra.mxu0 0.0
    %195 = vmatprep.subr.mxu0 0.0
    %196 = vmatpush1.msra.mxu0 0.0
    %197 = vmatprep.mubr.f32.mxu0 0.0
    %198 = vmatmul.mubr.f32.gmra.mrb[0].mxu0 %v112
    %v199 = vpop.f32.mrb[0].mxu0
    %v200 = vadd.f32 %v132, %v199
    %v201 = vpop.f32.mrb[0].mxu0
    %202 = vdwg.mxu0
    %v203 = vmax.f32 %v200, 0.0
    %v204 = vld [vmem:[#allocation7] sm:$0xff]
    %v205 = vld [vmem:[#allocation7 + $0x8] sm:$0xff]
    %v206 = vld [vmem:[#allocation7 + $0x10] sm:$0xff]
    %v207 = vld [vmem:[#allocation7 + $0x18] sm:$0xff]
    %v208 = vld [vmem:[#allocation7 + $0x20] sm:$0xff]
    %v209 = vld [vmem:[#allocation7 + $0x28] sm:$0xff]
    %v210 = vld [vmem:[#allocation7 + $0x30] sm:$0xff]
    %v211 = vld [vmem:[#allocation7 + $0x38] sm:$0xff]
    %v212 = vld [vmem:[#allocation7 + $0x40] sm:$0xff]
    %v213 = vld [vmem:[#allocation7 + $0x48] sm:$0xff]
    %v214 = vld [vmem:[#allocation7 + $0x50] sm:$0xff]
    %v215 = vld [vmem:[#allocation7 + $0x58] sm:$0xff]
    %v216 = vld [vmem:[#allocation7 + $0x60] sm:$0xff]
    %v217 = vld [vmem:[#allocation7 + $0x68] sm:$0xff]
    %v218 = vld [vmem:[#allocation7 + $0x70] sm:$0xff]
    %v219 = vld [vmem:[#allocation7 + $0x78] sm:$0xff]
    %v220 = vlaneseq
    %v221 = vshrl.u32 %v220, 7
    %v222 = vsub.s32 0, %v221
    %v223 = vrot.slane %v108, %v222
    %224 = vmatprep.subr.mxu0 0.0
    %225 = vmatpush1.msra.mxu0 %v204
    %226 = vmatprep.subr.mxu0 0.0
    %227 = vmatpush1.msra.mxu0 %v205
    %228 = vmatprep.subr.mxu0 0.0
    %229 = vmatpush1.msra.mxu0 %v206
    %230 = vmatprep.subr.mxu0 0.0
    %231 = vmatpush1.msra.mxu0 %v207
    %232 = vmatprep.subr.mxu0 0.0
    %233 = vmatpush1.msra.mxu0 %v208
    %234 = vmatprep.subr.mxu0 0.0
    %235 = vmatpush1.msra.mxu0 %v209
    %236 = vmatprep.subr.mxu0 0.0
    %237 = vmatpush1.msra.mxu0 %v210
    %238 = vmatprep.subr.mxu0 0.0
    %239 = vmatpush1.msra.mxu0 %v211
    %240 = vmatprep.subr.mxu0 0.0
    %241 = vmatpush1.msra.mxu0 %v212
    %242 = vmatprep.subr.mxu0 0.0
    %243 = vmatpush1.msra.mxu0 %v213
    %244 = vmatprep.subr.mxu0 0.0
    %245 = vmatpush1.msra.mxu0 %v214
    %246 = vmatprep.subr.mxu0 0.0
    %247 = vmatpush1.msra.mxu0 %v215
    %248 = vmatprep.subr.mxu0 0.0
    %249 = vmatpush1.msra.mxu0 %v216
    %250 = vmatprep.subr.mxu0 0.0
    %251 = vmatpush1.msra.mxu0 %v217
    %252 = vmatprep.subr.mxu0 0.0
    %253 = vmatpush1.msra.mxu0 %v218
    %254 = vmatprep.subr.mxu0 0.0
    %255 = vmatpush1.msra.mxu0 %v219
    %256 = vmatprep.subr.mxu0 0.0
    %257 = vmatpush1.msra.mxu0 0.0
    %258 = vmatprep.subr.mxu0 0.0
    %259 = vmatpush1.msra.mxu0 0.0
    %260 = vmatprep.subr.mxu0 0.0
    %261 = vmatpush1.msra.mxu0 0.0
    %262 = vmatprep.subr.mxu0 0.0
    %263 = vmatpush1.msra.mxu0 0.0
    %264 = vmatprep.subr.mxu0 0.0
    %265 = vmatpush1.msra.mxu0 0.0
    %266 = vmatprep.subr.mxu0 0.0
    %267 = vmatpush1.msra.mxu0 0.0
    %268 = vmatprep.subr.mxu0 0.0
    %269 = vmatpush1.msra.mxu0 0.0
    %270 = vmatprep.subr.mxu0 0.0
    %271 = vmatpush1.msra.mxu0 0.0
    %272 = vmatprep.subr.mxu0 0.0
    %273 = vmatpush1.msra.mxu0 0.0
    %274 = vmatprep.subr.mxu0 0.0
    %275 = vmatpush1.msra.mxu0 0.0
    %276 = vmatprep.subr.mxu0 0.0
    %277 = vmatpush1.msra.mxu0 0.0
    %278 = vmatprep.subr.mxu0 0.0
    %279 = vmatpush1.msra.mxu0 0.0
    %280 = vmatprep.subr.mxu0 0.0
    %281 = vmatpush1.msra.mxu0 0.0
    %282 = vmatprep.subr.mxu0 0.0
    %283 = vmatpush1.msra.mxu0 0.0
    %284 = vmatprep.subr.mxu0 0.0
    %285 = vmatpush1.msra.mxu0 0.0
    %286 = vmatprep.subr.mxu0 0.0
    %287 = vmatpush1.msra.mxu0 0.0
    %288 = vmatprep.mubr.f32.mxu0 0.0
    %289 = vmatmul.mubr.f32.gmra.mrb[0].mxu0 %v203
    %v290 = vpop.f32.mrb[0].mxu0
    %v291 = vadd.f32 %v223, %v290
    %v292 = vpop.f32.mrb[0].mxu0
    %293 = vdwg.mxu0
    %v294 = vld [vmem:[#allocation8] sm:$0xff]
    %v295 = vld [vmem:[#allocation8 + $0x8] sm:$0xff]
    %v296 = vld [vmem:[#allocation8 + $0x10] sm:$0xff]
    %v297 = vld [vmem:[#allocation8 + $0x18] sm:$0xff]
    %v298 = vld [vmem:[#allocation8 + $0x20] sm:$0xff]
    %v299 = vld [vmem:[#allocation8 + $0x28] sm:$0xff]
    %v300 = vld [vmem:[#allocation8 + $0x30] sm:$0xff]
    %v301 = vld [vmem:[#allocation8 + $0x38] sm:$0xff]
    %v302 = vld [vmem:[#allocation8 + $0x40] sm:$0xff]
    %v303 = vld [vmem:[#allocation8 + $0x48] sm:$0xff]
    %v304 = vld [vmem:[#allocation8 + $0x50] sm:$0xff]
    %v305 = vld [vmem:[#allocation8 + $0x58] sm:$0xff]
    %v306 = vld [vmem:[#allocation8 + $0x60] sm:$0xff]
    %v307 = vld [vmem:[#allocation8 + $0x68] sm:$0xff]
    %v308 = vld [vmem:[#allocation8 + $0x70] sm:$0xff]
    %v309 = vld [vmem:[#allocation8 + $0x78] sm:$0xff]
    %v310 = vld [vmem:[#allocation10] sm:$0xff]
    %v311 = vld [vmem:[#allocation10 + $0x8] sm:$0xff]
    %v312 = vld [vmem:[#allocation10 + $0x10] sm:$0xff]
    %v313 = vld [vmem:[#allocation10 + $0x18] sm:$0xff]
    %v314 = vld [vmem:[#allocation10 + $0x20] sm:$0xff]
    %v315 = vld [vmem:[#allocation10 + $0x28] sm:$0xff]
    %v316 = vld [vmem:[#allocation10 + $0x30] sm:$0xff]
    %v317 = vld [vmem:[#allocation10 + $0x38] sm:$0xff]
    %v318 = vld [vmem:[#allocation10 + $0x40] sm:$0xff]
    %v319 = vld [vmem:[#allocation10 + $0x48] sm:$0xff]
    %v320 = vld [vmem:[#allocation10 + $0x50] sm:$0xff]
    %v321 = vld [vmem:[#allocation10 + $0x58] sm:$0xff]
    %v322 = vld [vmem:[#allocation10 + $0x60] sm:$0xff]
    %v323 = vld [vmem:[#allocation10 + $0x68] sm:$0xff]
    %v324 = vld [vmem:[#allocation10 + $0x70] sm:$0xff]
    %v325 = vld [vmem:[#allocation10 + $0x78] sm:$0xff]
    %326 = vmatprep.subr.mxu0 0.0
    %327 = vmatpush1.msra.mxu0 %v310
    %328 = vmatprep.subr.mxu0 0.0
    %329 = vmatpush1.msra.mxu0 %v311
    %330 = vmatprep.subr.mxu0 0.0
    %331 = vmatpush1.msra.mxu0 %v312
    %332 = vmatprep.subr.mxu0 0.0
    %333 = vmatpush1.msra.mxu0 %v313
    %334 = vmatprep.subr.mxu0 0.0
    %335 = vmatpush1.msra.mxu0 %v314
    %336 = vmatprep.subr.mxu0 0.0
    %337 = vmatpush1.msra.mxu0 %v315
    %338 = vmatprep.subr.mxu0 0.0
    %339 = vmatpush1.msra.mxu0 %v316
    %340 = vmatprep.subr.mxu0 0.0
    %341 = vmatpush1.msra.mxu0 %v317
    %342 = vmatprep.subr.mxu0 0.0
    %343 = vmatpush1.msra.mxu0 %v318
    %344 = vmatprep.subr.mxu0 0.0
    %345 = vmatpush1.msra.mxu0 %v319
    %346 = vmatprep.subr.mxu0 0.0
    %347 = vmatpush1.msra.mxu0 %v320
    %348 = vmatprep.subr.mxu0 0.0
    %349 = vmatpush1.msra.mxu0 %v321
    %350 = vmatprep.subr.mxu0 0.0
    %351 = vmatpush1.msra.mxu0 %v322
    %352 = vmatprep.subr.mxu0 0.0
    %353 = vmatpush1.msra.mxu0 %v323
    %354 = vmatprep.subr.mxu0 0.0
    %355 = vmatpush1.msra.mxu0 %v324
    %356 = vmatprep.subr.mxu0 0.0
    %357 = vmatpush1.msra.mxu0 %v325
    %358 = vmatprep.subr.mxu0 0.0
    %359 = vmatpush1.msra.mxu0 0.0
    %360 = vmatprep.subr.mxu0 0.0
    %361 = vmatpush1.msra.mxu0 0.0
    %362 = vmatprep.subr.mxu0 0.0
    %363 = vmatpush1.msra.mxu0 0.0
    %364 = vmatprep.subr.mxu0 0.0
    %365 = vmatpush1.msra.mxu0 0.0
    %366 = vmatprep.subr.mxu0 0.0
    %367 = vmatpush1.msra.mxu0 0.0
    %368 = vmatprep.subr.mxu0 0.0
    %369 = vmatpush1.msra.mxu0 0.0
    %370 = vmatprep.subr.mxu0 0.0
    %371 = vmatpush1.msra.mxu0 0.0
    %372 = vmatprep.subr.mxu0 0.0
    %373 = vmatpush1.msra.mxu0 0.0
    %374 = vmatprep.subr.mxu0 0.0
    %375 = vmatpush1.msra.mxu0 0.0
    %376 = vmatprep.subr.mxu0 0.0
    %377 = vmatpush1.msra.mxu0 0.0
    %378 = vmatprep.subr.mxu0 0.0
    %379 = vmatpush1.msra.mxu0 0.0
    %380 = vmatprep.subr.mxu0 0.0
    %381 = vmatpush1.msra.mxu0 0.0
    %382 = vmatprep.subr.mxu0 0.0
    %383 = vmatpush1.msra.mxu0 0.0
    %384 = vmatprep.subr.mxu0 0.0
    %385 = vmatpush1.msra.mxu0 0.0
    %386 = vmatprep.subr.mxu0 0.0
    %387 = vmatpush1.msra.mxu0 0.0
    %388 = vmatprep.subr.mxu0 0.0
    %389 = vmatpush1.msra.mxu0 0.0
    %390 = vmatprep.mubr.f32.mxu0 0.0
    %391 = vmatmul.mubr.f32.gmra.mrb[0].mxu0 %v112
    %v392 = vpop.f32.mrb[0].mxu0
    %v393 = vadd.f32 0.0, %v392
    %v394 = vpop.f32.mrb[0].mxu0
    %395 = vdwg.mxu0
    %396 = vmatprep.subr.mxu0 0.0
    %397 = vmatpush1.msra.mxu0 %v294
    %398 = vmatprep.subr.mxu0 0.0
    %399 = vmatpush1.msra.mxu0 %v295
    %400 = vmatprep.subr.mxu0 0.0
    %401 = vmatpush1.msra.mxu0 %v296
    %402 = vmatprep.subr.mxu0 0.0
    %403 = vmatpush1.msra.mxu0 %v297
    %404 = vmatprep.subr.mxu0 0.0
    %405 = vmatpush1.msra.mxu0 %v298
    %406 = vmatprep.subr.mxu0 0.0
    %407 = vmatpush1.msra.mxu0 %v299
    %408 = vmatprep.subr.mxu0 0.0
    %409 = vmatpush1.msra.mxu0 %v300
    %410 = vmatprep.subr.mxu0 0.0
    %411 = vmatpush1.msra.mxu0 %v301
    %412 = vmatprep.subr.mxu0 0.0
    %413 = vmatpush1.msra.mxu0 %v302
    %414 = vmatprep.subr.mxu0 0.0
    %415 = vmatpush1.msra.mxu0 %v303
    %416 = vmatprep.subr.mxu0 0.0
    %417 = vmatpush1.msra.mxu0 %v304
    %418 = vmatprep.subr.mxu0 0.0
    %419 = vmatpush1.msra.mxu0 %v305
    %420 = vmatprep.subr.mxu0 0.0
    %421 = vmatpush1.msra.mxu0 %v306
    %422 = vmatprep.subr.mxu0 0.0
    %423 = vmatpush1.msra.mxu0 %v307
    %424 = vmatprep.subr.mxu0 0.0
    %425 = vmatpush1.msra.mxu0 %v308
    %426 = vmatprep.subr.mxu0 0.0
    %427 = vmatpush1.msra.mxu0 %v309
    %428 = vmatprep.subr.mxu0 0.0
    %429 = vmatpush1.msra.mxu0 0.0
    %430 = vmatprep.subr.mxu0 0.0
    %431 = vmatpush1.msra.mxu0 0.0
    %432 = vmatprep.subr.mxu0 0.0
    %433 = vmatpush1.msra.mxu0 0.0
    %434 = vmatprep.subr.mxu0 0.0
    %435 = vmatpush1.msra.mxu0 0.0
    %436 = vmatprep.subr.mxu0 0.0
    %437 = vmatpush1.msra.mxu0 0.0
    %438 = vmatprep.subr.mxu0 0.0
    %439 = vmatpush1.msra.mxu0 0.0
    %440 = vmatprep.subr.mxu0 0.0
    %441 = vmatpush1.msra.mxu0 0.0
    %442 = vmatprep.subr.mxu0 0.0
    %443 = vmatpush1.msra.mxu0 0.0
    %444 = vmatprep.subr.mxu0 0.0
    %445 = vmatpush1.msra.mxu0 0.0
    %446 = vmatprep.subr.mxu0 0.0
    %447 = vmatpush1.msra.mxu0 0.0
    %448 = vmatprep.subr.mxu0 0.0
    %449 = vmatpush1.msra.mxu0 0.0
    %450 = vmatprep.subr.mxu0 0.0
    %451 = vmatpush1.msra.mxu0 0.0
    %452 = vmatprep.subr.mxu0 0.0
    %453 = vmatpush1.msra.mxu0 0.0
    %454 = vmatprep.subr.mxu0 0.0
    %455 = vmatpush1.msra.mxu0 0.0
    %456 = vmatprep.subr.mxu0 0.0
    %457 = vmatpush1.msra.mxu0 0.0
    %458 = vmatprep.subr.mxu0 0.0
    %459 = vmatpush1.msra.mxu0 0.0
    %460 = vmatprep.mubr.f32.mxu0 0.0
    %461 = vmatmul.mubr.f32.gmra.mrb[0].mxu0 %v291
    %v462 = vpop.f32.mrb[0].mxu0
    %v463 = vadd.f32 %v393, %v462
    %v464 = vpop.f32.mrb[0].mxu0
    %465 = vdwg.mxu0
    %v466 = vlaneseq
    %v467 = vshrl.u32 %v466, 7
    %v468 = vsub.s32 0, %v467
    %v469 = vrot.slane %v109, %v468
    %v470 = vadd.f32 %v463, %v469
    %v471 = vmax.f32 %v470, 0.0
    %v472 = vld [vmem:[#allocation11] sm:$0xff]
    %v473 = vld [vmem:[#allocation11 + $0x8] sm:$0xff]
    %v474 = vld [vmem:[#allocation11 + $0x10] sm:$0xff]
    %v475 = vld [vmem:[#allocation11 + $0x18] sm:$0xff]
    %v476 = vld [vmem:[#allocation11 + $0x20] sm:$0xff]
    %v477 = vld [vmem:[#allocation11 + $0x28] sm:$0xff]
    %v478 = vld [vmem:[#allocation11 + $0x30] sm:$0xff]
    %v479 = vld [vmem:[#allocation11 + $0x38] sm:$0xff]
    %v480 = vld [vmem:[#allocation11 + $0x40] sm:$0xff]
    %v481 = vld [vmem:[#allocation11 + $0x48] sm:$0xff]
    %v482 = vld [vmem:[#allocation11 + $0x50] sm:$0xff]
    %v483 = vld [vmem:[#allocation11 + $0x58] sm:$0xff]
    %v484 = vld [vmem:[#allocation11 + $0x60] sm:$0xff]
    %v485 = vld [vmem:[#allocation11 + $0x68] sm:$0xff]
    %v486 = vld [vmem:[#allocation11 + $0x70] sm:$0xff]
    %v487 = vld [vmem:[#allocation11 + $0x78] sm:$0xff]
    %v488 = vlaneseq
    %v489 = vshrl.u32 %v488, 7
    %v490 = vsub.s32 0, %v489
    %v491 = vrot.slane %v110, %v490
    %492 = vmatprep.subr.mxu0 0.0
    %493 = vmatpush1.msra.mxu0 %v472
    %494 = vmatprep.subr.mxu0 0.0
    %495 = vmatpush1.msra.mxu0 %v473
    %496 = vmatprep.subr.mxu0 0.0
    %497 = vmatpush1.msra.mxu0 %v474
    %498 = vmatprep.subr.mxu0 0.0
    %499 = vmatpush1.msra.mxu0 %v475
    %500 = vmatprep.subr.mxu0 0.0
    %501 = vmatpush1.msra.mxu0 %v476
    %502 = vmatprep.subr.mxu0 0.0
    %503 = vmatpush1.msra.mxu0 %v477
    %504 = vmatprep.subr.mxu0 0.0
    %505 = vmatpush1.msra.mxu0 %v478
    %506 = vmatprep.subr.mxu0 0.0
    %507 = vmatpush1.msra.mxu0 %v479
    %508 = vmatprep.subr.mxu0 0.0
    %509 = vmatpush1.msra.mxu0 %v480
    %510 = vmatprep.subr.mxu0 0.0
    %511 = vmatpush1.msra.mxu0 %v481
    %512 = vmatprep.subr.mxu0 0.0
    %513 = vmatpush1.msra.mxu0 %v482
    %514 = vmatprep.subr.mxu0 0.0
    %515 = vmatpush1.msra.mxu0 %v483
    %516 = vmatprep.subr.mxu0 0.0
    %517 = vmatpush1.msra.mxu0 %v484
    %518 = vmatprep.subr.mxu0 0.0
    %519 = vmatpush1.msra.mxu0 %v485
    %520 = vmatprep.subr.mxu0 0.0
    %521 = vmatpush1.msra.mxu0 %v486
    %522 = vmatprep.subr.mxu0 0.0
    %523 = vmatpush1.msra.mxu0 %v487
    %524 = vmatprep.subr.mxu0 0.0
    %525 = vmatpush1.msra.mxu0 0.0
    %526 = vmatprep.subr.mxu0 0.0
    %527 = vmatpush1.msra.mxu0 0.0
    %528 = vmatprep.subr.mxu0 0.0
    %529 = vmatpush1.msra.mxu0 0.0
    %530 = vmatprep.subr.mxu0 0.0
    %531 = vmatpush1.msra.mxu0 0.0
    %532 = vmatprep.subr.mxu0 0.0
    %533 = vmatpush1.msra.mxu0 0.0
    %534 = vmatprep.subr.mxu0 0.0
    %535 = vmatpush1.msra.mxu0 0.0
    %536 = vmatprep.subr.mxu0 0.0
    %537 = vmatpush1.msra.mxu0 0.0
    %538 = vmatprep.subr.mxu0 0.0
    %539 = vmatpush1.msra.mxu0 0.0
    %540 = vmatprep.subr.mxu0 0.0
    %541 = vmatpush1.msra.mxu0 0.0
    %542 = vmatprep.subr.mxu0 0.0
    %543 = vmatpush1.msra.mxu0 0.0
    %544 = vmatprep.subr.mxu0 0.0
    %545 = vmatpush1.msra.mxu0 0.0
    %546 = vmatprep.subr.mxu0 0.0
    %547 = vmatpush1.msra.mxu0 0.0
    %548 = vmatprep.subr.mxu0 0.0
    %549 = vmatpush1.msra.mxu0 0.0
    %550 = vmatprep.subr.mxu0 0.0
    %551 = vmatpush1.msra.mxu0 0.0
    %552 = vmatprep.subr.mxu0 0.0
    %553 = vmatpush1.msra.mxu0 0.0
    %554 = vmatprep.subr.mxu0 0.0
    %555 = vmatpush1.msra.mxu0 0.0
    %556 = vmatprep.mubr.f32.mxu0 0.0
    %557 = vmatmul.mubr.f32.gmra.mrb[0].mxu0 %v471
    %v558 = vpop.f32.mrb[0].mxu0
    %v559 = vadd.f32 %v491, %v558
    %v560 = vpop.f32.mrb[0].mxu0
    %561 = vdwg.mxu0
    %v562 = vlaneseq
    %v563 = vshrl.u32 %v562, 7
    %v564 = vsub.s32 0, %v563
    %v565 = vrot.slane %v111, %v564
    %v566 = vmul.f32 %v291, %v565
    %v567 = vadd.f32 %v559, %v566
    %568 = vst [vmem:[#allocation13] sm:$0xff] %v567
    // Predicated region
    $region54: #{tpu_custom_call.1} parent=1 // pred_check
      _
    $region55: #{tpu_custom_call.1} parent=1 // pred_check_branch
      %570 = sbr.rel (0) target = $region57
    $region56: #{tpu_custom_call.1} parent=1 // pred_region
      %s572 = ssub.s32 128, 128
      %573 = vsyncadd [#allocation4], %s572
      %s575 = sshll.u32 [#allocation13], 4
      %s576 = int_to_ptr.vmem [resolvable:$true] %s575
      %578 = dma.vmem_to_hbm [thread:$0]  %s576, 128, %s7, [#allocation4]
    $region57: #{tpu_custom_call.1} parent=1 // pred_fallthru
      _
    // Predicated region
    $region58: #{tpu_custom_call.1} parent=1 // pred_check
      _
    $region59: #{tpu_custom_call.1} parent=1 // pred_check_branch
      %580 = sbr.rel (0) target = $region61
    $region60: #{tpu_custom_call.1} parent=1 // pred_region
      %581 = dma.done [#allocation4], 128
    $region61: #{tpu_custom_call.1} parent=1 // pred_fallthru
      _
    %582 = vsyncpa [#allocation3], 1
    %583 = vsyncpa [#allocation6], 1
    %584 = vsyncpa [#allocation9], 1
    %585 = vsyncpa [#allocation12], 1
    %586 = vsyncpa [#allocation4], 1

// kernel: tpu_custom_call.1
$region0: #{tpu_custom_call.1}
  #allocation0 [shape = 'u32[]', space=smem, size = 0x4, offset = 0x4, fixed_abs, tag = 'smem constant byte address 0x4 - core index']
  #allocation1 [shape = 'u32[144,128]{1,0:T(1,128)}', space=vmem, size = 0x12000, scoped, tag = 'internal scratch']
  %s0 = inlined_call_operand.hbm [shape: f32[8,128], index: 0, kind: input, shape index: {}]
  %s1 = inlined_call_operand.hbm [shape: f32[128,128], index: 1, kind: input, shape index: {}]
  %s2 = inlined_call_operand.hbm [shape: f32[128,128], index: 2, kind: input, shape index: {}]
  %s3 = inlined_call_operand.hbm [shape: f32[128,128], index: 3, kind: input, shape index: {}]
  %s4 = inlined_call_operand.hbm [shape: f32[128,128], index: 4, kind: input, shape index: {}]
  %s5 = inlined_call_operand.hbm [shape: f32[128,128], index: 5, kind: input, shape index: {}]
  %s6 = inlined_call_operand.vmem [shape: f32[8,128], index: 6, kind: input, shape index: {}]
  %s7 = inlined_call_operand.hbm [shape: f32[8,128], index: 7, kind: output, shape index: {}]
  %s8 = sld [smem:[#allocation0]]
  $region62: #{tpu_custom_call.1} parent=0
    _
  %s10 = ssub.s32 1, %s8
  %s11 = scalar_select 0, %s10, %s8
  $region1: #{tpu_custom_call.1} parent=0
    #allocation2 [shape = 'u8[4096]{0}', space=vmem, size = 0x1000, scoped, tag = 'input window, operand 0, single buffered']
    #allocation3 [shape = 's32[1]{0}', space=sflag, size = 0x4, scoped, tag = 'scoped memory for tpu_custom_call.1']
    #allocation4 [shape = 's32[1]{0}', space=sflag, size = 0x4, scoped, tag = 'scoped memory for tpu_custom_call.1']
    #allocation5 [shape = 'u8[65536]{0}', space=vmem, size = 0x10000, scoped, tag = 'input window, operand 1, single buffered']
    #allocation6 [shape = 's32[1]{0}', space=sflag, size = 0x4, scoped, tag = 'scoped memory for tpu_custom_call.1']
    #allocation7 [shape = 'u8[65536]{0}', space=vmem, size = 0x10000, scoped, tag = 'input window, operand 2, single buffered']
    #allocation8 [shape = 'u8[65536]{0}', space=vmem, size = 0x10000, scoped, tag = 'input window, operand 3, single buffered']
    #allocation9 [shape = 's32[1]{0}', space=sflag, size = 0x4, scoped, tag = 'scoped memory for tpu_custom_call.1']
    #allocation10 [shape = 'u8[65536]{0}', space=vmem, size = 0x10000, scoped, tag = 'input window, operand 4, single buffered']
    #allocation11 [shape = 'u8[65536]{0}', space=vmem, size = 0x10000, scoped, tag = 'input window, operand 5, single buffered']
    #allocation12 [shape = 's32[1]{0}', space=sflag, size = 0x4, scoped, tag = 'scoped memory for tpu_custom_call.1']
    #allocation13 [shape = 'u8[4096]{0}', space=vmem, size = 0x1000, scoped, tag = 'output window, operand 0, single buffered']
    %12 = vsyncpa [#allocation3], 0
    %13 = vsyncpa [#allocation6], 0
    %14 = vsyncpa [#allocation9], 0
    %15 = vsyncpa [#allocation12], 0
    %16 = vsyncpa [#allocation4], 0
    // Predicated region
    $region2: #{tpu_custom_call.1} parent=1 // pred_check
      _
    $region3: #{tpu_custom_call.1} parent=1 // pred_check_branch
      %18 = sbr.rel (0) target = $region5
    $region4: #{tpu_custom_call.1} parent=1 // pred_region
      %s20 = ssub.s32 128, 128
      %21 = vsyncadd [#allocation3], %s20
      %s23 = sshll.u32 [#allocation2], 4
      %s24 = int_to_ptr.vmem [resolvable:$true] %s23
      %26 = dma.hbm_to_vmem [thread:$0]  %s0, 128, %s24, [#allocation3]
    $region5: #{tpu_custom_call.1} parent=1 // pred_fallthru
      _
    // Predicated region
    $region6: #{tpu_custom_call.1} parent=1 // pred_check
      _
    $region7: #{tpu_custom_call.1} parent=1 // pred_check_branch
      %28 = sbr.rel (0) target = $region9
    $region8: #{tpu_custom_call.1} parent=1 // pred_region
      %s30 = ssub.s32 2048, 2048
      %31 = vsyncadd [#allocation6], %s30
      %s32 = sshll.u32 [#allocation5], 4
      %s33 = int_to_ptr.vmem [resolvable:$true] %s32
      %38 = dma.hbm_to_vmem [thread:$0]  %s1, 2048, %s33, [#allocation6], 128, 128, 8
    $region9: #{tpu_custom_call.1} parent=1 // pred_fallthru
      _
    // Predicated region
    $region10: #{tpu_custom_call.1} parent=1 // pred_check
      _
    $region11: #{tpu_custom_call.1} parent=1 // pred_check_branch
      %40 = sbr.rel (0) target = $region13
    $region12: #{tpu_custom_call.1} parent=1 // pred_region
      %s42 = ssub.s32 2048, 2048
      %43 = vsyncadd [#allocation6], %s42
      %s44 = sshll.u32 [#allocation7], 4
      %s45 = int_to_ptr.vmem [resolvable:$true] %s44
      %50 = dma.hbm_to_vmem [thread:$0]  %s2, 2048, %s45, [#allocation6], 128, 128, 8
    $region13: #{tpu_custom_call.1} parent=1 // pred_fallthru
      _
    // Predicated region
    $region14: #{tpu_custom_call.1} parent=1 // pred_check
      _
    $region15: #{tpu_custom_call.1} parent=1 // pred_check_branch
      %52 = sbr.rel (0) target = $region17
    $region16: #{tpu_custom_call.1} parent=1 // pred_region
      %s54 = ssub.s32 2048, 2048
      %55 = vsyncadd [#allocation9], %s54
      %s56 = sshll.u32 [#allocation8], 4
      %s57 = int_to_ptr.vmem [resolvable:$true] %s56
      %62 = dma.hbm_to_vmem [thread:$0]  %s3, 2048, %s57, [#allocation9], 128, 128, 8
    $region17: #{tpu_custom_call.1} parent=1 // pred_fallthru
      _
    // Predicated region
    $region18: #{tpu_custom_call.1} parent=1 // pred_check
      _
    $region19: #{tpu_custom_call.1} parent=1 // pred_check_branch
      %64 = sbr.rel (0) target = $region21
    $region20: #{tpu_custom_call.1} parent=1 // pred_region
      %s66 = ssub.s32 2048, 2048
      %67 = vsyncadd [#allocation9], %s66
      %s68 = sshll.u32 [#allocation10], 4
      %s69 = int_to_ptr.vmem [resolvable:$true] %s68
      %74 = dma.hbm_to_vmem [thread:$0]  %s4, 2048, %s69, [#allocation9], 128, 128, 8
    $region21: #{tpu_custom_call.1} parent=1 // pred_fallthru
      _
    // Predicated region
    $region22: #{tpu_custom_call.1} parent=1 // pred_check
      _
    $region23: #{tpu_custom_call.1} parent=1 // pred_check_branch
      %76 = sbr.rel (0) target = $region25
    $region24: #{tpu_custom_call.1} parent=1 // pred_region
      %s78 = ssub.s32 2048, 2048
      %79 = vsyncadd [#allocation12], %s78
      %s80 = sshll.u32 [#allocation11], 4
      %s81 = int_to_ptr.vmem [resolvable:$true] %s80
      %86 = dma.hbm_to_vmem [thread:$0]  %s5, 2048, %s81, [#allocation12], 128, 128, 8
    $region25: #{tpu_custom_call.1} parent=1 // pred_fallthru
      _
    // Predicated region
    $region26: #{tpu_custom_call.1} parent=1 // pred_check
      _
    $region27: #{tpu_custom_call.1} parent=1 // pred_check_branch
      %88 = sbr.rel (0) target = $region29
    $region28: #{tpu_custom_call.1} parent=1 // pred_region
      _
    $region29: #{tpu_custom_call.1} parent=1 // pred_fallthru
      _
    // Predicated region
    $region30: #{tpu_custom_call.1} parent=1 // pred_check
      _
    $region31: #{tpu_custom_call.1} parent=1 // pred_check_branch
      %90 = sbr.rel (0) target = $region33
    $region32: #{tpu_custom_call.1} parent=1 // pred_region
      %91 = dma.done [#allocation3], 128
    $region33: #{tpu_custom_call.1} parent=1 // pred_fallthru
      _
    // Predicated region
    $region34: #{tpu_custom_call.1} parent=1 // pred_check
      _
    $region35: #{tpu_custom_call.1} parent=1 // pred_check_branch
      %93 = sbr.rel (0) target = $region37
    $region36: #{tpu_custom_call.1} parent=1 // pred_region
      %94 = dma.done [#allocation6], 2048
    $region37: #{tpu_custom_call.1} parent=1 // pred_fallthru
      _
    // Predicated region
    $region38: #{tpu_custom_call.1} parent=1 // pred_check
      _
    $region39: #{tpu_custom_call.1} parent=1 // pred_check_branch
      %96 = sbr.rel (0) target = $region41
    $region40: #{tpu_custom_call.1} parent=1 // pred_region
      %97 = dma.done [#allocation6], 2048
    $region41: #{tpu_custom_call.1} parent=1 // pred_fallthru
      _
    // Predicated region
    $region42: #{tpu_custom_call.1} parent=1 // pred_check
      _
    $region43: #{tpu_custom_call.1} parent=1 // pred_check_branch
      %99 = sbr.rel (0) target = $region45
    $region44: #{tpu_custom_call.1} parent=1 // pred_region
      %100 = dma.done [#allocation9], 2048
    $region45: #{tpu_custom_call.1} parent=1 // pred_fallthru
      _
    // Predicated region
    $region46: #{tpu_custom_call.1} parent=1 // pred_check
      _
    $region47: #{tpu_custom_call.1} parent=1 // pred_check_branch
      %102 = sbr.rel (0) target = $region49
    $region48: #{tpu_custom_call.1} parent=1 // pred_region
      %103 = dma.done [#allocation9], 2048
    $region49: #{tpu_custom_call.1} parent=1 // pred_fallthru
      _
    // Predicated region
    $region50: #{tpu_custom_call.1} parent=1 // pred_check
      _
    $region51: #{tpu_custom_call.1} parent=1 // pred_check_branch
      %105 = sbr.rel (0) target = $region53
    $region52: #{tpu_custom_call.1} parent=1 // pred_region
      %106 = dma.done [#allocation12], 2048
    $region53: #{tpu_custom_call.1} parent=1 // pred_fallthru
      _
    %v107 = vld [vmem:[%s6] sm:$0x1]
    %v108 = vld [vmem:[%s6 + $0x1] sm:$0x1]
    %v109 = vld [vmem:[%s6 + $0x2] sm:$0x1]
    %v110 = vld [vmem:[%s6 + $0x3] sm:$0x1]
    %v111 = vld [vmem:[%s6 + $0x4] sm:$0x1]
    %v112 = vld [vmem:[#allocation2] sm:$0xff]
    %v113 = vld [vmem:[#allocation5] sm:$0xff]
    %v114 = vld [vmem:[#allocation5 + $0x8] sm:$0xff]
    %v115 = vld [vmem:[#allocation5 + $0x10] sm:$0xff]
    %v116 = vld [vmem:[#allocation5 + $0x18] sm:$0xff]
    %v117 = vld [vmem:[#allocation5 + $0x20] sm:$0xff]
    %v118 = vld [vmem:[#allocation5 + $0x28] sm:$0xff]
    %v119 = vld [vmem:[#allocation5 + $0x30] sm:$0xff]
    %v120 = vld [vmem:[#allocation5 + $0x38] sm:$0xff]
    %v121 = vld [vmem:[#allocation5 + $0x40] sm:$0xff]
    %v122 = vld [vmem:[#allocation5 + $0x48] sm:$0xff]
    %v123 = vld [vmem:[#allocation5 + $0x50] sm:$0xff]
    %v124 = vld [vmem:[#allocation5 + $0x58] sm:$0xff]
    %v125 = vld [vmem:[#allocation5 + $0x60] sm:$0xff]
    %v126 = vld [vmem:[#allocation5 + $0x68] sm:$0xff]
    %v127 = vld [vmem:[#allocation5 + $0x70] sm:$0xff]
    %v128 = vld [vmem:[#allocation5 + $0x78] sm:$0xff]
    %v129 = vlaneseq
    %v130 = vshrl.u32 %v129, 7
    %v131 = vsub.s32 0, %v130
    %v132 = vrot.slane %v107, %v131
    %133 = vmatprep.subr.mxu0 0.0
    %134 = vmatpush1.msra.mxu0 %v113
    %135 = vmatprep.subr.mxu0 0.0
    %136 = vmatpush1.msra.mxu0 %v114
    %137 = vmatprep.subr.mxu0 0.0
    %138 = vmatpush1.msra.mxu0 %v115
    %139 = vmatprep.subr.mxu0 0.0
    %140 = vmatpush1.msra.mxu0 %v116
    %141 = vmatprep.subr.mxu0 0.0
    %142 = vmatpush1.msra.mxu0 %v117
    %143 = vmatprep.subr.mxu0 0.0
    %144 = vmatpush1.msra.mxu0 %v118
    %145 = vmatprep.subr.mxu0 0.0
    %146 = vmatpush1.msra.mxu0 %v119
    %147 = vmatprep.subr.mxu0 0.0
    %148 = vmatpush1.msra.mxu0 %v120
    %149 = vmatprep.subr.mxu0 0.0
    %150 = vmatpush1.msra.mxu0 %v121
    %151 = vmatprep.subr.mxu0 0.0
    %152 = vmatpush1.msra.mxu0 %v122
    %153 = vmatprep.subr.mxu0 0.0
    %154 = vmatpush1.msra.mxu0 %v123
    %155 = vmatprep.subr.mxu0 0.0
    %156 = vmatpush1.msra.mxu0 %v124
    %157 = vmatprep.subr.mxu0 0.0
    %158 = vmatpush1.msra.mxu0 %v125
    %159 = vmatprep.subr.mxu0 0.0
    %160 = vmatpush1.msra.mxu0 %v126
    %161 = vmatprep.subr.mxu0 0.0
    %162 = vmatpush1.msra.mxu0 %v127
    %163 = vmatprep.subr.mxu0 0.0
    %164 = vmatpush1.msra.mxu0 %v128
    %165 = vmatprep.subr.mxu0 0.0
    %166 = vmatpush1.msra.mxu0 0.0
    %167 = vmatprep.subr.mxu0 0.0
    %168 = vmatpush1.msra.mxu0 0.0
    %169 = vmatprep.subr.mxu0 0.0
    %170 = vmatpush1.msra.mxu0 0.0
    %171 = vmatprep.subr.mxu0 0.0
    %172 = vmatpush1.msra.mxu0 0.0
    %173 = vmatprep.subr.mxu0 0.0
    %174 = vmatpush1.msra.mxu0 0.0
    %175 = vmatprep.subr.mxu0 0.0
    %176 = vmatpush1.msra.mxu0 0.0
    %177 = vmatprep.subr.mxu0 0.0
    %178 = vmatpush1.msra.mxu0 0.0
    %179 = vmatprep.subr.mxu0 0.0
    %180 = vmatpush1.msra.mxu0 0.0
    %181 = vmatprep.subr.mxu0 0.0
    %182 = vmatpush1.msra.mxu0 0.0
    %183 = vmatprep.subr.mxu0 0.0
    %184 = vmatpush1.msra.mxu0 0.0
    %185 = vmatprep.subr.mxu0 0.0
    %186 = vmatpush1.msra.mxu0 0.0
    %187 = vmatprep.subr.mxu0 0.0
    %188 = vmatpush1.msra.mxu0 0.0
    %189 = vmatprep.subr.mxu0 0.0
    %190 = vmatpush1.msra.mxu0 0.0
    %191 = vmatprep.subr.mxu0 0.0
    %192 = vmatpush1.msra.mxu0 0.0
    %193 = vmatprep.subr.mxu0 0.0
    %194 = vmatpush1.msra.mxu0 0.0
    %195 = vmatprep.subr.mxu0 0.0
    %196 = vmatpush1.msra.mxu0 0.0
    %197 = vmatprep.mubr.f32.mxu0 0.0
    %198 = vmatmul.mubr.f32.gmra.mrb[0].mxu0 %v112
    %v199 = vpop.f32.mrb[0].mxu0
    %v200 = vadd.f32 %v132, %v199
    %v201 = vpop.f32.mrb[0].mxu0
    %202 = vdwg.mxu0
    %v203 = vmax.f32 %v200, 0.0
    %v204 = vld [vmem:[#allocation7] sm:$0xff]
    %v205 = vld [vmem:[#allocation7 + $0x8] sm:$0xff]
    %v206 = vld [vmem:[#allocation7 + $0x10] sm:$0xff]
    %v207 = vld [vmem:[#allocation7 + $0x18] sm:$0xff]
    %v208 = vld [vmem:[#allocation7 + $0x20] sm:$0xff]
    %v209 = vld [vmem:[#allocation7 + $0x28] sm:$0xff]
    %v210 = vld [vmem:[#allocation7 + $0x30] sm:$0xff]
    %v211 = vld [vmem:[#allocation7 + $0x38] sm:$0xff]
    %v212 = vld [vmem:[#allocation7 + $0x40] sm:$0xff]
    %v213 = vld [vmem:[#allocation7 + $0x48] sm:$0xff]
    %v214 = vld [vmem:[#allocation7 + $0x50] sm:$0xff]
    %v215 = vld [vmem:[#allocation7 + $0x58] sm:$0xff]
    %v216 = vld [vmem:[#allocation7 + $0x60] sm:$0xff]
    %v217 = vld [vmem:[#allocation7 + $0x68] sm:$0xff]
    %v218 = vld [vmem:[#allocation7 + $0x70] sm:$0xff]
    %v219 = vld [vmem:[#allocation7 + $0x78] sm:$0xff]
    %v220 = vlaneseq
    %v221 = vshrl.u32 %v220, 7
    %v222 = vsub.s32 0, %v221
    %v223 = vrot.slane %v108, %v222
    %224 = vmatprep.subr.mxu0 0.0
    %225 = vmatpush1.msra.mxu0 %v204
    %226 = vmatprep.subr.mxu0 0.0
    %227 = vmatpush1.msra.mxu0 %v205
    %228 = vmatprep.subr.mxu0 0.0
    %229 = vmatpush1.msra.mxu0 %v206
    %230 = vmatprep.subr.mxu0 0.0
    %231 = vmatpush1.msra.mxu0 %v207
    %232 = vmatprep.subr.mxu0 0.0
    %233 = vmatpush1.msra.mxu0 %v208
    %234 = vmatprep.subr.mxu0 0.0
    %235 = vmatpush1.msra.mxu0 %v209
    %236 = vmatprep.subr.mxu0 0.0
    %237 = vmatpush1.msra.mxu0 %v210
    %238 = vmatprep.subr.mxu0 0.0
    %239 = vmatpush1.msra.mxu0 %v211
    %240 = vmatprep.subr.mxu0 0.0
    %241 = vmatpush1.msra.mxu0 %v212
    %242 = vmatprep.subr.mxu0 0.0
    %243 = vmatpush1.msra.mxu0 %v213
    %244 = vmatprep.subr.mxu0 0.0
    %245 = vmatpush1.msra.mxu0 %v214
    %246 = vmatprep.subr.mxu0 0.0
    %247 = vmatpush1.msra.mxu0 %v215
    %248 = vmatprep.subr.mxu0 0.0
    %249 = vmatpush1.msra.mxu0 %v216
    %250 = vmatprep.subr.mxu0 0.0
    %251 = vmatpush1.msra.mxu0 %v217
    %252 = vmatprep.subr.mxu0 0.0
    %253 = vmatpush1.msra.mxu0 %v218
    %254 = vmatprep.subr.mxu0 0.0
    %255 = vmatpush1.msra.mxu0 %v219
    %256 = vmatprep.subr.mxu0 0.0
    %257 = vmatpush1.msra.mxu0 0.0
    %258 = vmatprep.subr.mxu0 0.0
    %259 = vmatpush1.msra.mxu0 0.0
    %260 = vmatprep.subr.mxu0 0.0
    %261 = vmatpush1.msra.mxu0 0.0
    %262 = vmatprep.subr.mxu0 0.0
    %263 = vmatpush1.msra.mxu0 0.0
    %264 = vmatprep.subr.mxu0 0.0
    %265 = vmatpush1.msra.mxu0 0.0
    %266 = vmatprep.subr.mxu0 0.0
    %267 = vmatpush1.msra.mxu0 0.0
    %268 = vmatprep.subr.mxu0 0.0
    %269 = vmatpush1.msra.mxu0 0.0
    %270 = vmatprep.subr.mxu0 0.0
    %271 = vmatpush1.msra.mxu0 0.0
    %272 = vmatprep.subr.mxu0 0.0
    %273 = vmatpush1.msra.mxu0 0.0
    %274 = vmatprep.subr.mxu0 0.0
    %275 = vmatpush1.msra.mxu0 0.0
    %276 = vmatprep.subr.mxu0 0.0
    %277 = vmatpush1.msra.mxu0 0.0
    %278 = vmatprep.subr.mxu0 0.0
    %279 = vmatpush1.msra.mxu0 0.0
    %280 = vmatprep.subr.mxu0 0.0
    %281 = vmatpush1.msra.mxu0 0.0
    %282 = vmatprep.subr.mxu0 0.0
    %283 = vmatpush1.msra.mxu0 0.0
    %284 = vmatprep.subr.mxu0 0.0
    %285 = vmatpush1.msra.mxu0 0.0
    %286 = vmatprep.subr.mxu0 0.0
    %287 = vmatpush1.msra.mxu0 0.0
    %288 = vmatprep.mubr.f32.mxu0 0.0
    %289 = vmatmul.mubr.f32.gmra.mrb[0].mxu0 %v203
    %v290 = vpop.f32.mrb[0].mxu0
    %v291 = vadd.f32 %v223, %v290
    %v292 = vpop.f32.mrb[0].mxu0
    %293 = vdwg.mxu0
    %v294 = vld [vmem:[#allocation8] sm:$0xff]
    %v295 = vld [vmem:[#allocation8 + $0x8] sm:$0xff]
    %v296 = vld [vmem:[#allocation8 + $0x10] sm:$0xff]
    %v297 = vld [vmem:[#allocation8 + $0x18] sm:$0xff]
    %v298 = vld [vmem:[#allocation8 + $0x20] sm:$0xff]
    %v299 = vld [vmem:[#allocation8 + $0x28] sm:$0xff]
    %v300 = vld [vmem:[#allocation8 + $0x30] sm:$0xff]
    %v301 = vld [vmem:[#allocation8 + $0x38] sm:$0xff]
    %v302 = vld [vmem:[#allocation8 + $0x40] sm:$0xff]
    %v303 = vld [vmem:[#allocation8 + $0x48] sm:$0xff]
    %v304 = vld [vmem:[#allocation8 + $0x50] sm:$0xff]
    %v305 = vld [vmem:[#allocation8 + $0x58] sm:$0xff]
    %v306 = vld [vmem:[#allocation8 + $0x60] sm:$0xff]
    %v307 = vld [vmem:[#allocation8 + $0x68] sm:$0xff]
    %v308 = vld [vmem:[#allocation8 + $0x70] sm:$0xff]
    %v309 = vld [vmem:[#allocation8 + $0x78] sm:$0xff]
    %v310 = vld [vmem:[#allocation10] sm:$0xff]
    %v311 = vld [vmem:[#allocation10 + $0x8] sm:$0xff]
    %v312 = vld [vmem:[#allocation10 + $0x10] sm:$0xff]
    %v313 = vld [vmem:[#allocation10 + $0x18] sm:$0xff]
    %v314 = vld [vmem:[#allocation10 + $0x20] sm:$0xff]
    %v315 = vld [vmem:[#allocation10 + $0x28] sm:$0xff]
    %v316 = vld [vmem:[#allocation10 + $0x30] sm:$0xff]
    %v317 = vld [vmem:[#allocation10 + $0x38] sm:$0xff]
    %v318 = vld [vmem:[#allocation10 + $0x40] sm:$0xff]
    %v319 = vld [vmem:[#allocation10 + $0x48] sm:$0xff]
    %v320 = vld [vmem:[#allocation10 + $0x50] sm:$0xff]
    %v321 = vld [vmem:[#allocation10 + $0x58] sm:$0xff]
    %v322 = vld [vmem:[#allocation10 + $0x60] sm:$0xff]
    %v323 = vld [vmem:[#allocation10 + $0x68] sm:$0xff]
    %v324 = vld [vmem:[#allocation10 + $0x70] sm:$0xff]
    %v325 = vld [vmem:[#allocation10 + $0x78] sm:$0xff]
    %326 = vmatprep.subr.mxu0 0.0
    %327 = vmatpush1.msra.mxu0 %v310
    %328 = vmatprep.subr.mxu0 0.0
    %329 = vmatpush1.msra.mxu0 %v311
    %330 = vmatprep.subr.mxu0 0.0
    %331 = vmatpush1.msra.mxu0 %v312
    %332 = vmatprep.subr.mxu0 0.0
    %333 = vmatpush1.msra.mxu0 %v313
    %334 = vmatprep.subr.mxu0 0.0
    %335 = vmatpush1.msra.mxu0 %v314
    %336 = vmatprep.subr.mxu0 0.0
    %337 = vmatpush1.msra.mxu0 %v315
    %338 = vmatprep.subr.mxu0 0.0
    %339 = vmatpush1.msra.mxu0 %v316
    %340 = vmatprep.subr.mxu0 0.0
    %341 = vmatpush1.msra.mxu0 %v317
    %342 = vmatprep.subr.mxu0 0.0
    %343 = vmatpush1.msra.mxu0 %v318
    %344 = vmatprep.subr.mxu0 0.0
    %345 = vmatpush1.msra.mxu0 %v319
    %346 = vmatprep.subr.mxu0 0.0
    %347 = vmatpush1.msra.mxu0 %v320
    %348 = vmatprep.subr.mxu0 0.0
    %349 = vmatpush1.msra.mxu0 %v321
    %350 = vmatprep.subr.mxu0 0.0
    %351 = vmatpush1.msra.mxu0 %v322
    %352 = vmatprep.subr.mxu0 0.0
    %353 = vmatpush1.msra.mxu0 %v323
    %354 = vmatprep.subr.mxu0 0.0
    %355 = vmatpush1.msra.mxu0 %v324
    %356 = vmatprep.subr.mxu0 0.0
    %357 = vmatpush1.msra.mxu0 %v325
    %358 = vmatprep.subr.mxu0 0.0
    %359 = vmatpush1.msra.mxu0 0.0
    %360 = vmatprep.subr.mxu0 0.0
    %361 = vmatpush1.msra.mxu0 0.0
    %362 = vmatprep.subr.mxu0 0.0
    %363 = vmatpush1.msra.mxu0 0.0
    %364 = vmatprep.subr.mxu0 0.0
    %365 = vmatpush1.msra.mxu0 0.0
    %366 = vmatprep.subr.mxu0 0.0
    %367 = vmatpush1.msra.mxu0 0.0
    %368 = vmatprep.subr.mxu0 0.0
    %369 = vmatpush1.msra.mxu0 0.0
    %370 = vmatprep.subr.mxu0 0.0
    %371 = vmatpush1.msra.mxu0 0.0
    %372 = vmatprep.subr.mxu0 0.0
    %373 = vmatpush1.msra.mxu0 0.0
    %374 = vmatprep.subr.mxu0 0.0
    %375 = vmatpush1.msra.mxu0 0.0
    %376 = vmatprep.subr.mxu0 0.0
    %377 = vmatpush1.msra.mxu0 0.0
    %378 = vmatprep.subr.mxu0 0.0
    %379 = vmatpush1.msra.mxu0 0.0
    %380 = vmatprep.subr.mxu0 0.0
    %381 = vmatpush1.msra.mxu0 0.0
    %382 = vmatprep.subr.mxu0 0.0
    %383 = vmatpush1.msra.mxu0 0.0
    %384 = vmatprep.subr.mxu0 0.0
    %385 = vmatpush1.msra.mxu0 0.0
    %386 = vmatprep.subr.mxu0 0.0
    %387 = vmatpush1.msra.mxu0 0.0
    %388 = vmatprep.subr.mxu0 0.0
    %389 = vmatpush1.msra.mxu0 0.0
    %390 = vmatprep.mubr.f32.mxu0 0.0
    %391 = vmatmul.mubr.f32.gmra.mrb[0].mxu0 %v112
    %v392 = vpop.f32.mrb[0].mxu0
    %v393 = vadd.f32 0.0, %v392
    %v394 = vpop.f32.mrb[0].mxu0
    %395 = vdwg.mxu0
    %396 = vmatprep.subr.mxu0 0.0
    %397 = vmatpush1.msra.mxu0 %v294
    %398 = vmatprep.subr.mxu0 0.0
    %399 = vmatpush1.msra.mxu0 %v295
    %400 = vmatprep.subr.mxu0 0.0
    %401 = vmatpush1.msra.mxu0 %v296
    %402 = vmatprep.subr.mxu0 0.0
    %403 = vmatpush1.msra.mxu0 %v297
    %404 = vmatprep.subr.mxu0 0.0
    %405 = vmatpush1.msra.mxu0 %v298
    %406 = vmatprep.subr.mxu0 0.0
    %407 = vmatpush1.msra.mxu0 %v299
    %408 = vmatprep.subr.mxu0 0.0
    %409 = vmatpush1.msra.mxu0 %v300
    %410 = vmatprep.subr.mxu0 0.0
    %411 = vmatpush1.msra.mxu0 %v301
    %412 = vmatprep.subr.mxu0 0.0
    %413 = vmatpush1.msra.mxu0 %v302
    %414 = vmatprep.subr.mxu0 0.0
    %415 = vmatpush1.msra.mxu0 %v303
    %416 = vmatprep.subr.mxu0 0.0
    %417 = vmatpush1.msra.mxu0 %v304
    %418 = vmatprep.subr.mxu0 0.0
    %419 = vmatpush1.msra.mxu0 %v305
    %420 = vmatprep.subr.mxu0 0.0
    %421 = vmatpush1.msra.mxu0 %v306
    %422 = vmatprep.subr.mxu0 0.0
    %423 = vmatpush1.msra.mxu0 %v307
    %424 = vmatprep.subr.mxu0 0.0
    %425 = vmatpush1.msra.mxu0 %v308
    %426 = vmatprep.subr.mxu0 0.0
    %427 = vmatpush1.msra.mxu0 %v309
    %428 = vmatprep.subr.mxu0 0.0
    %429 = vmatpush1.msra.mxu0 0.0
    %430 = vmatprep.subr.mxu0 0.0
    %431 = vmatpush1.msra.mxu0 0.0
    %432 = vmatprep.subr.mxu0 0.0
    %433 = vmatpush1.msra.mxu0 0.0
    %434 = vmatprep.subr.mxu0 0.0
    %435 = vmatpush1.msra.mxu0 0.0
    %436 = vmatprep.subr.mxu0 0.0
    %437 = vmatpush1.msra.mxu0 0.0
    %438 = vmatprep.subr.mxu0 0.0
    %439 = vmatpush1.msra.mxu0 0.0
    %440 = vmatprep.subr.mxu0 0.0
    %441 = vmatpush1.msra.mxu0 0.0
    %442 = vmatprep.subr.mxu0 0.0
    %443 = vmatpush1.msra.mxu0 0.0
    %444 = vmatprep.subr.mxu0 0.0
    %445 = vmatpush1.msra.mxu0 0.0
    %446 = vmatprep.subr.mxu0 0.0
    %447 = vmatpush1.msra.mxu0 0.0
    %448 = vmatprep.subr.mxu0 0.0
    %449 = vmatpush1.msra.mxu0 0.0
    %450 = vmatprep.subr.mxu0 0.0
    %451 = vmatpush1.msra.mxu0 0.0
    %452 = vmatprep.subr.mxu0 0.0
    %453 = vmatpush1.msra.mxu0 0.0
    %454 = vmatprep.subr.mxu0 0.0
    %455 = vmatpush1.msra.mxu0 0.0
    %456 = vmatprep.subr.mxu0 0.0
    %457 = vmatpush1.msra.mxu0 0.0
    %458 = vmatprep.subr.mxu0 0.0
    %459 = vmatpush1.msra.mxu0 0.0
    %460 = vmatprep.mubr.f32.mxu0 0.0
    %461 = vmatmul.mubr.f32.gmra.mrb[0].mxu0 %v291
    %v462 = vpop.f32.mrb[0].mxu0
    %v463 = vadd.f32 %v393, %v462
    %v464 = vpop.f32.mrb[0].mxu0
    %465 = vdwg.mxu0
    %v466 = vlaneseq
    %v467 = vshrl.u32 %v466, 7
    %v468 = vsub.s32 0, %v467
    %v469 = vrot.slane %v109, %v468
    %v470 = vadd.f32 %v463, %v469
    %v471 = vmax.f32 %v470, 0.0
    %v472 = vld [vmem:[#allocation11] sm:$0xff]
    %v473 = vld [vmem:[#allocation11 + $0x8] sm:$0xff]
    %v474 = vld [vmem:[#allocation11 + $0x10] sm:$0xff]
    %v475 = vld [vmem:[#allocation11 + $0x18] sm:$0xff]
    %v476 = vld [vmem:[#allocation11 + $0x20] sm:$0xff]
    %v477 = vld [vmem:[#allocation11 + $0x28] sm:$0xff]
    %v478 = vld [vmem:[#allocation11 + $0x30] sm:$0xff]
    %v479 = vld [vmem:[#allocation11 + $0x38] sm:$0xff]
    %v480 = vld [vmem:[#allocation11 + $0x40] sm:$0xff]
    %v481 = vld [vmem:[#allocation11 + $0x48] sm:$0xff]
    %v482 = vld [vmem:[#allocation11 + $0x50] sm:$0xff]
    %v483 = vld [vmem:[#allocation11 + $0x58] sm:$0xff]
    %v484 = vld [vmem:[#allocation11 + $0x60] sm:$0xff]
    %v485 = vld [vmem:[#allocation11 + $0x68] sm:$0xff]
    %v486 = vld [vmem:[#allocation11 + $0x70] sm:$0xff]
    %v487 = vld [vmem:[#allocation11 + $0x78] sm:$0xff]
    %v488 = vlaneseq
    %v489 = vshrl.u32 %v488, 7
    %v490 = vsub.s32 0, %v489
    %v491 = vrot.slane %v110, %v490
    %492 = vmatprep.subr.mxu0 0.0
    %493 = vmatpush1.msra.mxu0 %v472
    %494 = vmatprep.subr.mxu0 0.0
    %495 = vmatpush1.msra.mxu0 %v473
    %496 = vmatprep.subr.mxu0 0.0
    %497 = vmatpush1.msra.mxu0 %v474
    %498 = vmatprep.subr.mxu0 0.0
    %499 = vmatpush1.msra.mxu0 %v475
    %500 = vmatprep.subr.mxu0 0.0
    %501 = vmatpush1.msra.mxu0 %v476
    %502 = vmatprep.subr.mxu0 0.0
    %503 = vmatpush1.msra.mxu0 %v477
    %504 = vmatprep.subr.mxu0 0.0
    %505 = vmatpush1.msra.mxu0 %v478
    %506 = vmatprep.subr.mxu0 0.0
    %507 = vmatpush1.msra.mxu0 %v479
    %508 = vmatprep.subr.mxu0 0.0
    %509 = vmatpush1.msra.mxu0 %v480
    %510 = vmatprep.subr.mxu0 0.0
    %511 = vmatpush1.msra.mxu0 %v481
    %512 = vmatprep.subr.mxu0 0.0
    %513 = vmatpush1.msra.mxu0 %v482
    %514 = vmatprep.subr.mxu0 0.0
    %515 = vmatpush1.msra.mxu0 %v483
    %516 = vmatprep.subr.mxu0 0.0
    %517 = vmatpush1.msra.mxu0 %v484
    %518 = vmatprep.subr.mxu0 0.0
    %519 = vmatpush1.msra.mxu0 %v485
    %520 = vmatprep.subr.mxu0 0.0
    %521 = vmatpush1.msra.mxu0 %v486
    %522 = vmatprep.subr.mxu0 0.0
    %523 = vmatpush1.msra.mxu0 %v487
    %524 = vmatprep.subr.mxu0 0.0
    %525 = vmatpush1.msra.mxu0 0.0
    %526 = vmatprep.subr.mxu0 0.0
    %527 = vmatpush1.msra.mxu0 0.0
    %528 = vmatprep.subr.mxu0 0.0
    %529 = vmatpush1.msra.mxu0 0.0
    %530 = vmatprep.subr.mxu0 0.0
    %531 = vmatpush1.msra.mxu0 0.0
    %532 = vmatprep.subr.mxu0 0.0
    %533 = vmatpush1.msra.mxu0 0.0
    %534 = vmatprep.subr.mxu0 0.0
    %535 = vmatpush1.msra.mxu0 0.0
    %536 = vmatprep.subr.mxu0 0.0
    %537 = vmatpush1.msra.mxu0 0.0
    %538 = vmatprep.subr.mxu0 0.0
    %539 = vmatpush1.msra.mxu0 0.0
    %540 = vmatprep.subr.mxu0 0.0
    %541 = vmatpush1.msra.mxu0 0.0
    %542 = vmatprep.subr.mxu0 0.0
    %543 = vmatpush1.msra.mxu0 0.0
    %544 = vmatprep.subr.mxu0 0.0
    %545 = vmatpush1.msra.mxu0 0.0
    %546 = vmatprep.subr.mxu0 0.0
    %547 = vmatpush1.msra.mxu0 0.0
    %548 = vmatprep.subr.mxu0 0.0
    %549 = vmatpush1.msra.mxu0 0.0
    %550 = vmatprep.subr.mxu0 0.0
    %551 = vmatpush1.msra.mxu0 0.0
    %552 = vmatprep.subr.mxu0 0.0
    %553 = vmatpush1.msra.mxu0 0.0
    %554 = vmatprep.subr.mxu0 0.0
    %555 = vmatpush1.msra.mxu0 0.0
    %556 = vmatprep.mubr.f32.mxu0 0.0
    %557 = vmatmul.mubr.f32.gmra.mrb[0].mxu0 %v471
    %v558 = vpop.f32.mrb[0].mxu0
    %v559 = vadd.f32 %v491, %v558
    %v560 = vpop.f32.mrb[0].mxu0
    %561 = vdwg.mxu0
    %v562 = vlaneseq
    %v563 = vshrl.u32 %v562, 7
    %v564 = vsub.s32 0, %v563
    %v565 = vrot.slane %v111, %v564
    %v566 = vmul.f32 %v291, %v565
    %v567 = vadd.f32 %v559, %v566
    %568 = vst [vmem:[#allocation13] sm:$0xff] %v567
    // Predicated region
    $region54: #{tpu_custom_call.1} parent=1 // pred_check
      _
    $region55: #{tpu_custom_call.1} parent=1 // pred_check_branch
      %570 = sbr.rel (0) target = $region57
    $region56: #{tpu_custom_call.1} parent=1 // pred_region
      %s572 = ssub.s32 128, 128
      %573 = vsyncadd [#allocation4], %s572
      %s575 = sshll.u32 [#allocation13], 4
      %s576 = int_to_ptr.vmem [resolvable:$true] %s575
      %578 = dma.vmem_to_hbm [thread:$0]  %s576, 128, %s7, [#allocation4]
    $region57: #{tpu_custom_call.1} parent=1 // pred_fallthru
      _
    // Predicated region
    $region58: #{tpu_custom_call.1} parent=1 // pred_check
      _
    $region59: #{tpu_custom_call.1} parent=1 // pred_check_branch
      %580 = sbr.rel (0) target = $region61
    $region60: #{tpu_custom_call.1} parent=1 // pred_region
      %581 = dma.done [#allocation4], 128
    $region61: #{tpu_custom_call.1} parent=1 // pred_fallthru
      _
    %582 = vsyncpa [#allocation3], 1
    %583 = vsyncpa [#allocation6], 1
    %584 = vsyncpa [#allocation9], 1
    %585 = vsyncpa [#allocation12], 1
    %586 = vsyncpa [#allocation4], 1

</llo_original>
